<compile_context>
chip_gen: v7x
topology: tpu7x:2x2x1
jax: 0.10.0
libtpu: 0.0.40
codegen_flags: <defaults>
</compile_context>

<pallas_src>
import numpy as np
import jax
import jax.numpy as jnp
from jax import lax
from jax.experimental import pallas as pl
from jax.experimental.pallas import tpu as pltpu


def adaptive_pool_matrix(n_in, n_out):
    """P[i, j] = 1/|bin_i| if j in bin_i else 0  (nn.AdaptiveAvgPool2d bins)."""
    p = np.zeros((n_out, n_in), np.float32)
    for i in range(n_out):
        s = (i * n_in) // n_out
        e = -((-(i + 1) * n_in) // n_out)  # ceil((i+1)*n_in/n_out)
        p[i, s:e] = 1.0 / (e - s)
    return p


def _make_stnca_kernel(H, W, C, G):
    HW = H * W
    CHUNK = 128 if HW % 128 == 0 else HW     # multiple of 128 for MXU cadence
    NCHUNK = HW // CHUNK
    POW2 = (W & (W - 1)) == 0
    SHIFT = max(W.bit_length() - 1, 0)
    f32 = jnp.float32

    def kernel(img_ref, ppool_ref, w1cat_ref, sel_ref, rsel_ref, fold_ref,
               b1_ref, w2_ref, b2_ref, coords_ref, offs_ref, out_ref):
        img_blk = img_ref[...]                                   # (G*C, HW)

        # ---- theta path from the SAME image block (single HBM read) ----
        # AdaptiveAvgPool2d((6,6)) as one matmul over the flattened HW axis.
        pooled = jnp.dot(img_blk, ppool_ref[...],
                         preferred_element_type=f32)             # (G*C, 36)
        # fc1 with the channel coupling expressed via matmul + select mask:
        #   full[r, c*20+k] = sum_j pooled[r, j] * w1[k, c*36+j]
        full = jnp.dot(pooled, w1cat_ref[...],
                       preferred_element_type=f32)               # (G*C, C*20)
        part = full * sel_ref[...]          # keep only own-channel block
        rows = jnp.dot(rsel_ref[...], part,
                       preferred_element_type=f32)               # (G, C*20)
        theta_in = jnp.dot(rows, fold_ref[...],
                           preferred_element_type=f32)           # (G, 20)
        h1 = jnp.tanh(theta_in + b1_ref[...])
        # TODO(synk): nn.Dropout(p=0.8) is identity at inference; training-mode
        # stochastic dropout (pltpu.prng_*) is not implemented here.
        z = jnp.dot(h1, w2_ref[...], preferred_element_type=f32) + b2_ref[...]
        theta = jnp.tanh(jnp.tanh(z))                            # (G, 6)

        # ---- affine_grid (align_corners=False base grid, default of
        # F.affine_grid) + grid_sample unnormalization (align_corners=True,
        # as explicitly passed), folded into one tiny matmul:
        # ixy[g, p] = ix, ixy[g, HW+p] = iy.
        ixy = jnp.dot(theta, coords_ref[...],
                      preferred_element_type=f32) + offs_ref[...]  # (G, 2*HW)

        # source-pixel coordinates on the contraction (sublane) axis
        q = lax.broadcasted_iota(jnp.int32, (HW, 1), 0)
        if POW2:
            qy = q >> SHIFT
            qx = q & (W - 1)
        else:
            qy = q // W
            qx = q % W
        qyf = qy.astype(f32)
        qxf = qx.astype(f32)

        for g in range(G):                    # static, small (<= 8)
            img_g = img_blk[g * C:(g + 1) * C, :]                # (C, HW)
            for ci in range(NCHUNK):          # static, unrolled chunk loop
                ps = ci * CHUNK
                ix = ixy[g:g + 1, ps:ps + CHUNK]                 # (1, CHUNK)
                iy = ixy[g:g + 1, HW + ps:HW + ps + CHUNK]
                # Tent weights: exactly bilinear + padding_mode='zeros'
                # (out-of-bounds corners match no q -> zero contribution).
                ax = jnp.maximum(1.0 - jnp.abs(qxf - ix), 0.0)   # (HW, CHUNK)
                ay = jnp.maximum(1.0 - jnp.abs(qyf - iy), 0.0)
                m = ax * ay                   # q-major RHS, p on lanes
                res = jnp.dot(img_g, m.astype(img_g.dtype),
                              preferred_element_type=f32)        # (C, CHUNK)
                out_ref[g * C:(g + 1) * C, ps:ps + CHUNK] = res.astype(
                    out_ref.dtype)

    return kernel


def stnca_forward(img, w1, b1, w2, b2):
    """Pallas implementation of STNCA.forward (inference mode)."""
    B, C, H, W = img.shape
    HW = H * W

    # ---- batch coalescing: pack G batch elems per grid step (>=8 sublanes) --
    G = 1
    if C < 8:
        for g_cand in range(min(max(1, 8 // C), B), 0, -1):
            if B % g_cand == 0:
                G = g_cand
                break
    NB = B // G

    # ---- host-side constants ------------------------------------------------
    # Pooling matrix over the flattened HW axis: Ppool[y*W+x, qy*6+qx].
    ph = adaptive_pool_matrix(H, 6)                       # (6, H)
    pw = adaptive_pool_matrix(W, 6)                       # (6, W)
    ppool = np.einsum("py,qx->yxpq", ph, pw).reshape(HW, 36).astype(np.float32)

    # fc1 weight rearranged so that w1cat[j, c*20+k] = w1[k, c*36+j].
    w1cat = jnp.reshape(
        jnp.transpose(jnp.reshape(w1.astype(jnp.float32), (20, C, 36)),
                      (2, 1, 0)), (36, C * 20))

    # Channel-select mask / group-sum / column-fold constants (all 0/1).
    sel = (np.arange(C * 20)[None, :] // 20
           == np.arange(G * C)[:, None] % C).astype(np.float32)   # (G*C, C*20)
    rsel = np.kron(np.eye(G, dtype=np.float32),
                   np.ones((1, C), np.float32))                    # (G, G*C)
    fold = np.tile(np.eye(20, dtype=np.float32), (C, 1))           # (C*20, 20)

    # ---- constants so that  theta @ coords + offs == [ix | iy] ----
    xs = (2.0 * np.arange(W, dtype=np.float32) + 1.0) / W - 1.0
    ys = (2.0 * np.arange(H, dtype=np.float32) + 1.0) / H - 1.0
    xb = np.tile(xs, H)          # per output pixel p = oy*W + ox
    yb = np.repeat(ys, W)
    sW = 0.5 * (W - 1)
    sH = 0.5 * (H - 1)
    coords = np.zeros((6, 2 * HW), np.float32)
    coords[0, :HW] = sW * xb
    coords[1, :HW] = sW * yb
    coords[2, :HW] = sW
    coords[3, HW:] = sH * xb
    coords[4, HW:] = sH * yb
    coords[5, HW:] = sH
    offs = np.concatenate([np.full(HW, sW, np.float32),
                           np.full(HW, sH, np.float32)])[None, :]

    img3 = img.reshape(NB, G * C, HW)     # the single image view (native dtype)

    kernel = _make_stnca_kernel(H, W, C, G)
    out3 = pl.pallas_call(
        kernel,
        grid=(NB,),
        in_specs=[
            pl.BlockSpec((None, G * C, HW), lambda b: (b, 0, 0)),
            pl.BlockSpec((HW, 36), lambda b: (0, 0)),
            pl.BlockSpec((36, C * 20), lambda b: (0, 0)),
            pl.BlockSpec((G * C, C * 20), lambda b: (0, 0)),
            pl.BlockSpec((G, G * C), lambda b: (0, 0)),
            pl.BlockSpec((C * 20, 20), lambda b: (0, 0)),
            pl.BlockSpec((1, 20), lambda b: (0, 0)),
            pl.BlockSpec((20, 6), lambda b: (0, 0)),
            pl.BlockSpec((1, 6), lambda b: (0, 0)),
            pl.BlockSpec((6, 2 * HW), lambda b: (0, 0)),
            pl.BlockSpec((1, 2 * HW), lambda b: (0, 0)),
        ],
        out_specs=pl.BlockSpec((None, G * C, HW), lambda b: (b, 0, 0)),
        out_shape=jax.ShapeDtypeStruct((NB, G * C, HW), img.dtype),
        compiler_params=pltpu.CompilerParams(
            dimension_semantics=("parallel",),
            vmem_limit_bytes=32 * 1024 * 1024,   # safe on v5e/v6e/v7x
        ),
    )(img3,
      jnp.asarray(ppool, img.dtype),
      w1cat,
      jnp.asarray(sel),
      jnp.asarray(rsel),
      jnp.asarray(fold),
      b1.astype(jnp.float32).reshape(1, 20),
      w2.astype(jnp.float32).T,
      b2.astype(jnp.float32).reshape(1, 6),
      jnp.asarray(coords),
      jnp.asarray(offs))

    return out3.reshape(B, C, H, W)


def stnca_reference(img, w1, b1, w2, b2):
    """Pure-JAX reference of the PyTorch forward (inference mode)."""
    B, C, H, W = img.shape
    ph = jnp.asarray(adaptive_pool_matrix(H, 6))
    pw = jnp.asarray(adaptive_pool_matrix(W, 6))
    pooled = jnp.einsum("py,bcyx,qx->bcpq", ph, img, pw,
                        precision=lax.Precision.HIGHEST)
    x = pooled.reshape(B, -1)
    h1 = jnp.tanh(x @ w1.T + b1)
    theta = jnp.tanh(jnp.tanh(h1 @ w2.T + b2)).reshape(B, 2, 3)

    xs = (2.0 * jnp.arange(W, dtype=jnp.float32) + 1.0) / W - 1.0
    ys = (2.0 * jnp.arange(H, dtype=jnp.float32) + 1.0) / H - 1.0
    yb, xb = jnp.meshgrid(ys, xs, indexing="ij")  # (H, W)
    gx = theta[:, 0, 0, None, None] * xb + theta[:, 0, 1, None, None] * yb \
        + theta[:, 0, 2, None, None]
    gy = theta[:, 1, 0, None, None] * xb + theta[:, 1, 1, None, None] * yb \
        + theta[:, 1, 2, None, None]
    ix = (gx + 1.0) * 0.5 * (W - 1)
    iy = (gy + 1.0) * 0.5 * (H - 1)
    x0 = jnp.floor(ix).astype(jnp.int32)
    y0 = jnp.floor(iy).astype(jnp.int32)
    x1 = x0 + 1
    y1 = y0 + 1
    wx1 = ix - x0
    wx0 = 1.0 - wx1
    wy1 = iy - y0
    wy0 = 1.0 - wy1

    bidx = jnp.arange(B)[:, None, None, None]
    cidx = jnp.arange(C)[None, :, None, None]

    def corner(yi, xi, wgt):
        valid = ((yi >= 0) & (yi < H) & (xi >= 0) & (xi < W)).astype(img.dtype)
        yc = jnp.clip(yi, 0, H - 1)
        xc = jnp.clip(xi, 0, W - 1)
        vals = img[bidx, cidx, yc[:, None, :, :], xc[:, None, :, :]]
        return vals * (wgt * valid)[:, None, :, :]

    return (corner(y0, x0, wy0 * wx0) + corner(y0, x1, wy0 * wx1)
            + corner(y1, x0, wy1 * wx0) + corner(y1, x1, wy1 * wx1))


if __name__ == "__main__":
    key = jax.random.PRNGKey(0)
    B, C, H, W = 2, 4, 16, 16
    k_img, k_w1, k_b1 = jax.random.split(key, 3)

    img = jax.random.normal(k_img, (B, C, H, W), jnp.float32)
    # fc[0]: Linear(in=C*6*6, out=20) — deterministic random init
    w1 = jax.random.normal(k_w1, (20, C * 36), jnp.float32) * 0.05
    b1 = jax.random.normal(k_b1, (20,), jnp.float32) * 0.05
    # fc[3]: Linear(20 -> 6) — module __init__ zeroes weight, identity-affine bias
    w2 = jnp.zeros((6, 20), jnp.float32)
    b2 = jnp.asarray([1.0, 0.0, 0.0, 0.0, 1.0, 0.0], jnp.float32)

    out = stnca_forward(img, w1, b1, w2, b2)
    out = jax.block_until_ready(out)

    ref = stnca_reference(img, w1, b1, w2, b2)
    assert out.shape == (B, C, H, W)
    np.testing.assert_allclose(np.asarray(out), np.asarray(ref),
                               atol=1e-4, rtol=1e-3)
    print("KERNEL_OK")
</pallas_src>

<mosaic_0001>
module attributes {stable_mosaic.version = 11 : i64} {
  func.func @kernel(%arg0: i32, %arg1: memref<1x8x256xf32, #tpu.memory_space<vmem>>, %arg2: memref<256x36xf32, #tpu.memory_space<vmem>>, %arg3: memref<36x80xf32, #tpu.memory_space<vmem>>, %arg4: memref<8x80xf32, #tpu.memory_space<vmem>>, %arg5: memref<2x8xf32, #tpu.memory_space<vmem>>, %arg6: memref<80x20xf32, #tpu.memory_space<vmem>>, %arg7: memref<1x20xf32, #tpu.memory_space<vmem>>, %arg8: memref<20x6xf32, #tpu.memory_space<vmem>>, %arg9: memref<1x6xf32, #tpu.memory_space<vmem>>, %arg10: memref<6x512xf32, #tpu.memory_space<vmem>>, %arg11: memref<1x512xf32, #tpu.memory_space<vmem>>, %arg12: memref<1x8x256xf32, #tpu.memory_space<vmem>>) attributes {dimension_semantics = [#tpu.dimension_semantics<parallel>], iteration_bounds = array<i64: 1>, scalar_prefetch = 0 : i64, scratch_operands = 0 : i64, tpu.core_type = #tpu.core_type<tc>, window_params = [{transform_indices = @transform_0, window_bounds = array<i64: 1, 8, 256>}, {pipeline_mode = #tpu.pipeline_mode<synchronous>, transform_indices = @transform_1, window_bounds = array<i64: 256, 36>}, {pipeline_mode = #tpu.pipeline_mode<synchronous>, transform_indices = @transform_2, window_bounds = array<i64: 36, 80>}, {pipeline_mode = #tpu.pipeline_mode<synchronous>, transform_indices = @transform_3, window_bounds = array<i64: 8, 80>}, {pipeline_mode = #tpu.pipeline_mode<synchronous>, transform_indices = @transform_4, window_bounds = array<i64: 2, 8>}, {pipeline_mode = #tpu.pipeline_mode<synchronous>, transform_indices = @transform_5, window_bounds = array<i64: 80, 20>}, {pipeline_mode = #tpu.pipeline_mode<synchronous>, transform_indices = @transform_6, window_bounds = array<i64: 1, 20>}, {pipeline_mode = #tpu.pipeline_mode<synchronous>, transform_indices = @transform_7, window_bounds = array<i64: 20, 6>}, {pipeline_mode = #tpu.pipeline_mode<synchronous>, transform_indices = @transform_8, window_bounds = array<i64: 1, 6>}, {pipeline_mode = #tpu.pipeline_mode<synchronous>, transform_indices = @transform_9, window_bounds = array<i64: 6, 512>}, {pipeline_mode = #tpu.pipeline_mode<synchronous>, transform_indices = @transform_10, window_bounds = array<i64: 1, 512>}, {transform_indices = @transform_11, window_bounds = array<i64: 1, 8, 256>}]} {
    %c0 = arith.constant 0 : index
    %c0_0 = arith.constant 0 : index
    %c0_1 = arith.constant 0 : index
    %0 = vector.load %arg1[%c0, %c0_0, %c0_1] : memref<1x8x256xf32, #tpu.memory_space<vmem>>, vector<1x8x256xf32>
    %1 = vector.shape_cast %0 : vector<1x8x256xf32> to vector<8x256xf32>
    %c0_2 = arith.constant 0 : index
    %c0_3 = arith.constant 0 : index
    %2 = vector.load %arg2[%c0_2, %c0_3] : memref<256x36xf32, #tpu.memory_space<vmem>>, vector<256x36xf32>
    %cst = arith.constant dense<0.000000e+00> : vector<8x36xf32>
    %3 = tpu.matmul %1, %2, %cst {dimension_numbers = #tpu.dot_dimension_numbers<[1], [0], [0], [1], [0, 0, 1, 1], [], []>} : vector<8x256xf32>, vector<256x36xf32>, vector<8x36xf32> -> vector<8x36xf32>
    %c0_4 = arith.constant 0 : index
    %c0_5 = arith.constant 0 : index
    %4 = vector.load %arg3[%c0_4, %c0_5] : memref<36x80xf32, #tpu.memory_space<vmem>>, vector<36x80xf32>
    %cst_6 = arith.constant dense<0.000000e+00> : vector<8x80xf32>
    %5 = tpu.matmul %3, %4, %cst_6 {dimension_numbers = #tpu.dot_dimension_numbers<[1], [0], [0], [1], [0, 0, 1, 1], [], []>} : vector<8x36xf32>, vector<36x80xf32>, vector<8x80xf32> -> vector<8x80xf32>
    %c0_7 = arith.constant 0 : index
    %c0_8 = arith.constant 0 : index
    %6 = vector.load %arg4[%c0_7, %c0_8] : memref<8x80xf32, #tpu.memory_space<vmem>>, vector<8x80xf32>
    %7 = arith.mulf %5, %6 : vector<8x80xf32>
    %c0_9 = arith.constant 0 : index
    %c0_10 = arith.constant 0 : index
    %8 = vector.load %arg5[%c0_9, %c0_10] : memref<2x8xf32, #tpu.memory_space<vmem>>, vector<2x8xf32>
    %cst_11 = arith.constant dense<0.000000e+00> : vector<2x80xf32>
    %9 = tpu.matmul %8, %7, %cst_11 {dimension_numbers = #tpu.dot_dimension_numbers<[1], [0], [0], [1], [0, 0, 1, 1], [], []>} : vector<2x8xf32>, vector<8x80xf32>, vector<2x80xf32> -> vector<2x80xf32>
    %c0_12 = arith.constant 0 : index
    %c0_13 = arith.constant 0 : index
    %10 = vector.load %arg6[%c0_12, %c0_13] : memref<80x20xf32, #tpu.memory_space<vmem>>, vector<80x20xf32>
    %cst_14 = arith.constant dense<0.000000e+00> : vector<2x20xf32>
    %11 = tpu.matmul %9, %10, %cst_14 {dimension_numbers = #tpu.dot_dimension_numbers<[1], [0], [0], [1], [0, 0, 1, 1], [], []>} : vector<2x80xf32>, vector<80x20xf32>, vector<2x20xf32> -> vector<2x20xf32>
    %c0_15 = arith.constant 0 : index
    %c0_16 = arith.constant 0 : index
    %12 = vector.load %arg7[%c0_15, %c0_16] : memref<1x20xf32, #tpu.memory_space<vmem>>, vector<1x20xf32>
    %13 = vector.broadcast %12 : vector<1x20xf32> to vector<2x20xf32>
    %14 = arith.addf %11, %13 : vector<2x20xf32>
    %15 = math.tanh %14 : vector<2x20xf32>
    %c0_17 = arith.constant 0 : index
    %c0_18 = arith.constant 0 : index
    %16 = vector.load %arg8[%c0_17, %c0_18] : memref<20x6xf32, #tpu.memory_space<vmem>>, vector<20x6xf32>
    %cst_19 = arith.constant dense<0.000000e+00> : vector<2x6xf32>
    %17 = tpu.matmul %15, %16, %cst_19 {dimension_numbers = #tpu.dot_dimension_numbers<[1], [0], [0], [1], [0, 0, 1, 1], [], []>} : vector<2x20xf32>, vector<20x6xf32>, vector<2x6xf32> -> vector<2x6xf32>
    %c0_20 = arith.constant 0 : index
    %c0_21 = arith.constant 0 : index
    %18 = vector.load %arg9[%c0_20, %c0_21] : memref<1x6xf32, #tpu.memory_space<vmem>>, vector<1x6xf32>
    %19 = vector.broadcast %18 : vector<1x6xf32> to vector<2x6xf32>
    %20 = arith.addf %17, %19 : vector<2x6xf32>
    %21 = math.tanh %20 : vector<2x6xf32>
    %22 = math.tanh %21 : vector<2x6xf32>
    %c0_22 = arith.constant 0 : index
    %c0_23 = arith.constant 0 : index
    %23 = vector.load %arg10[%c0_22, %c0_23] : memref<6x512xf32, #tpu.memory_space<vmem>>, vector<6x512xf32>
    %cst_24 = arith.constant dense<0.000000e+00> : vector<2x512xf32>
    %24 = tpu.matmul %22, %23, %cst_24 {dimension_numbers = #tpu.dot_dimension_numbers<[1], [0], [0], [1], [0, 0, 1, 1], [], []>} : vector<2x6xf32>, vector<6x512xf32>, vector<2x512xf32> -> vector<2x512xf32>
    %c0_25 = arith.constant 0 : index
    %c0_26 = arith.constant 0 : index
    %25 = vector.load %arg11[%c0_25, %c0_26] : memref<1x512xf32, #tpu.memory_space<vmem>>, vector<1x512xf32>
    %26 = vector.broadcast %25 : vector<1x512xf32> to vector<2x512xf32>
    %27 = arith.addf %24, %26 : vector<2x512xf32>
    %28 = tpu.iota {dimensions = array<i32: 0>} : vector<256x1xi32>
    %c4_i32 = arith.constant 4 : i32
    %29 = vector.broadcast %c4_i32 : i32 to vector<256x1xi32>
    %30 = arith.shrsi %28, %29 : vector<256x1xi32>
    %c15_i32 = arith.constant 15 : i32
    %31 = vector.broadcast %c15_i32 : i32 to vector<256x1xi32>
    %32 = arith.andi %28, %31 : vector<256x1xi32>
    %33 = arith.sitofp %30 : vector<256x1xi32> to vector<256x1xf32>
    %34 = arith.sitofp %32 : vector<256x1xi32> to vector<256x1xf32>
    %35 = vector.extract_strided_slice %1 {offsets = [0, 0], sizes = [4, 256], strides = [1, 1]} : vector<8x256xf32> to vector<4x256xf32>
    %36 = vector.extract_strided_slice %27 {offsets = [0, 0], sizes = [1, 128], strides = [1, 1]} : vector<2x512xf32> to vector<1x128xf32>
    %37 = vector.extract_strided_slice %27 {offsets = [0, 256], sizes = [1, 128], strides = [1, 1]} : vector<2x512xf32> to vector<1x128xf32>
    %38 = vector.broadcast %34 : vector<256x1xf32> to vector<256x128xf32>
    %39 = vector.broadcast %36 : vector<1x128xf32> to vector<256x128xf32>
    %40 = arith.subf %38, %39 : vector<256x128xf32>
    %41 = math.absf %40 : vector<256x128xf32>
    %cst_27 = arith.constant 1.000000e+00 : f32
    %42 = vector.broadcast %cst_27 : f32 to vector<256x128xf32>
    %43 = arith.subf %42, %41 : vector<256x128xf32>
    %cst_28 = arith.constant 0.000000e+00 : f32
    %44 = vector.broadcast %cst_28 : f32 to vector<256x128xf32>
    %45 = arith.maximumf %43, %44 : vector<256x128xf32>
    %46 = vector.broadcast %33 : vector<256x1xf32> to vector<256x128xf32>
    %47 = vector.broadcast %37 : vector<1x128xf32> to vector<256x128xf32>
    %48 = arith.subf %46, %47 : vector<256x128xf32>
    %49 = math.absf %48 : vector<256x128xf32>
    %cst_29 = arith.constant 1.000000e+00 : f32
    %50 = vector.broadcast %cst_29 : f32 to vector<256x128xf32>
    %51 = arith.subf %50, %49 : vector<256x128xf32>
    %cst_30 = arith.constant 0.000000e+00 : f32
    %52 = vector.broadcast %cst_30 : f32 to vector<256x128xf32>
    %53 = arith.maximumf %51, %52 : vector<256x128xf32>
    %54 = arith.mulf %45, %53 : vector<256x128xf32>
    %cst_31 = arith.constant dense<0.000000e+00> : vector<4x128xf32>
    %55 = tpu.matmul %35, %54, %cst_31 {dimension_numbers = #tpu.dot_dimension_numbers<[1], [0], [0], [1], [0, 0, 1, 1], [], []>} : vector<4x256xf32>, vector<256x128xf32>, vector<4x128xf32> -> vector<4x128xf32>
    %c0_32 = arith.constant 0 : index
    %c0_33 = arith.constant 0 : index
    %c0_34 = arith.constant 0 : index
    %56 = vector.load %arg12[%c0_32, %c0_33, %c0_34] : memref<1x8x256xf32, #tpu.memory_space<vmem>>, vector<1x4x128xf32>
    %57 = vector.shape_cast %56 : vector<1x4x128xf32> to vector<4x128xf32>
    %58 = vector.shape_cast %55 : vector<4x128xf32> to vector<1x4x128xf32>
    tpu.vector_store %arg12[%c0_32, %c0_33, %c0_34], %58 {strides = array<i32>} : memref<1x8x256xf32, #tpu.memory_space<vmem>>, vector<1x4x128xf32>,
    %59 = vector.extract_strided_slice %27 {offsets = [0, 128], sizes = [1, 128], strides = [1, 1]} : vector<2x512xf32> to vector<1x128xf32>
    %60 = vector.extract_strided_slice %27 {offsets = [0, 384], sizes = [1, 128], strides = [1, 1]} : vector<2x512xf32> to vector<1x128xf32>
    %61 = vector.broadcast %34 : vector<256x1xf32> to vector<256x128xf32>
    %62 = vector.broadcast %59 : vector<1x128xf32> to vector<256x128xf32>
    %63 = arith.subf %61, %62 : vector<256x128xf32>
    %64 = math.absf %63 : vector<256x128xf32>
    %cst_35 = arith.constant 1.000000e+00 : f32
    %65 = vector.broadcast %cst_35 : f32 to vector<256x128xf32>
    %66 = arith.subf %65, %64 : vector<256x128xf32>
    %cst_36 = arith.constant 0.000000e+00 : f32
    %67 = vector.broadcast %cst_36 : f32 to vector<256x128xf32>
    %68 = arith.maximumf %66, %67 : vector<256x128xf32>
    %69 = vector.broadcast %33 : vector<256x1xf32> to vector<256x128xf32>
    %70 = vector.broadcast %60 : vector<1x128xf32> to vector<256x128xf32>
    %71 = arith.subf %69, %70 : vector<256x128xf32>
    %72 = math.absf %71 : vector<256x128xf32>
    %cst_37 = arith.constant 1.000000e+00 : f32
    %73 = vector.broadcast %cst_37 : f32 to vector<256x128xf32>
    %74 = arith.subf %73, %72 : vector<256x128xf32>
    %cst_38 = arith.constant 0.000000e+00 : f32
    %75 = vector.broadcast %cst_38 : f32 to vector<256x128xf32>
    %76 = arith.maximumf %74, %75 : vector<256x128xf32>
    %77 = arith.mulf %68, %76 : vector<256x128xf32>
    %cst_39 = arith.constant dense<0.000000e+00> : vector<4x128xf32>
    %78 = tpu.matmul %35, %77, %cst_39 {dimension_numbers = #tpu.dot_dimension_numbers<[1], [0], [0], [1], [0, 0, 1, 1], [], []>} : vector<4x256xf32>, vector<256x128xf32>, vector<4x128xf32> -> vector<4x128xf32>
    %c0_40 = arith.constant 0 : index
    %c0_41 = arith.constant 0 : index
    %c128 = arith.constant 128 : index
    %79 = vector.load %arg12[%c0_40, %c0_41, %c128] : memref<1x8x256xf32, #tpu.memory_space<vmem>>, vector<1x4x128xf32>
    %80 = vector.shape_cast %79 : vector<1x4x128xf32> to vector<4x128xf32>
    %81 = vector.shape_cast %78 : vector<4x128xf32> to vector<1x4x128xf32>
    tpu.vector_store %arg12[%c0_40, %c0_41, %c128], %81 {strides = array<i32>} : memref<1x8x256xf32, #tpu.memory_space<vmem>>, vector<1x4x128xf32>,
    %82 = vector.extract_strided_slice %1 {offsets = [4, 0], sizes = [4, 256], strides = [1, 1]} : vector<8x256xf32> to vector<4x256xf32>
    %83 = vector.extract_strided_slice %27 {offsets = [1, 0], sizes = [1, 128], strides = [1, 1]} : vector<2x512xf32> to vector<1x128xf32>
    %84 = vector.extract_strided_slice %27 {offsets = [1, 256], sizes = [1, 128], strides = [1, 1]} : vector<2x512xf32> to vector<1x128xf32>
    %85 = vector.broadcast %34 : vector<256x1xf32> to vector<256x128xf32>
    %86 = vector.broadcast %83 : vector<1x128xf32> to vector<256x128xf32>
    %87 = arith.subf %85, %86 : vector<256x128xf32>
    %88 = math.absf %87 : vector<256x128xf32>
    %cst_42 = arith.constant 1.000000e+00 : f32
    %89 = vector.broadcast %cst_42 : f32 to vector<256x128xf32>
    %90 = arith.subf %89, %88 : vector<256x128xf32>
    %cst_43 = arith.constant 0.000000e+00 : f32
    %91 = vector.broadcast %cst_43 : f32 to vector<256x128xf32>
    %92 = arith.maximumf %90, %91 : vector<256x128xf32>
    %93 = vector.broadcast %33 : vector<256x1xf32> to vector<256x128xf32>
    %94 = vector.broadcast %84 : vector<1x128xf32> to vector<256x128xf32>
    %95 = arith.subf %93, %94 : vector<256x128xf32>
    %96 = math.absf %95 : vector<256x128xf32>
    %cst_44 = arith.constant 1.000000e+00 : f32
    %97 = vector.broadcast %cst_44 : f32 to vector<256x128xf32>
    %98 = arith.subf %97, %96 : vector<256x128xf32>
    %cst_45 = arith.constant 0.000000e+00 : f32
    %99 = vector.broadcast %cst_45 : f32 to vector<256x128xf32>
    %100 = arith.maximumf %98, %99 : vector<256x128xf32>
    %101 = arith.mulf %92, %100 : vector<256x128xf32>
    %cst_46 = arith.constant dense<0.000000e+00> : vector<4x128xf32>
    %102 = tpu.matmul %82, %101, %cst_46 {dimension_numbers = #tpu.dot_dimension_numbers<[1], [0], [0], [1], [0, 0, 1, 1], [], []>} : vector<4x256xf32>, vector<256x128xf32>, vector<4x128xf32> -> vector<4x128xf32>
    %c0_47 = arith.constant 0 : index
    %c4 = arith.constant 4 : index
    %c0_48 = arith.constant 0 : index
    %103 = vector.load %arg12[%c0_47, %c4, %c0_48] : memref<1x8x256xf32, #tpu.memory_space<vmem>>, vector<1x4x128xf32>
    %104 = vector.shape_cast %103 : vector<1x4x128xf32> to vector<4x128xf32>
    %105 = vector.shape_cast %102 : vector<4x128xf32> to vector<1x4x128xf32>
    tpu.vector_store %arg12[%c0_47, %c4, %c0_48], %105 {strides = array<i32>} : memref<1x8x256xf32, #tpu.memory_space<vmem>>, vector<1x4x128xf32>,
    %106 = vector.extract_strided_slice %27 {offsets = [1, 128], sizes = [1, 128], strides = [1, 1]} : vector<2x512xf32> to vector<1x128xf32>
    %107 = vector.extract_strided_slice %27 {offsets = [1, 384], sizes = [1, 128], strides = [1, 1]} : vector<2x512xf32> to vector<1x128xf32>
    %108 = vector.broadcast %34 : vector<256x1xf32> to vector<256x128xf32>
    %109 = vector.broadcast %106 : vector<1x128xf32> to vector<256x128xf32>
    %110 = arith.subf %108, %109 : vector<256x128xf32>
    %111 = math.absf %110 : vector<256x128xf32>
    %cst_49 = arith.constant 1.000000e+00 : f32
    %112 = vector.broadcast %cst_49 : f32 to vector<256x128xf32>
    %113 = arith.subf %112, %111 : vector<256x128xf32>
    %cst_50 = arith.constant 0.000000e+00 : f32
    %114 = vector.broadcast %cst_50 : f32 to vector<256x128xf32>
    %115 = arith.maximumf %113, %114 : vector<256x128xf32>
    %116 = vector.broadcast %33 : vector<256x1xf32> to vector<256x128xf32>
    %117 = vector.broadcast %107 : vector<1x128xf32> to vector<256x128xf32>
    %118 = arith.subf %116, %117 : vector<256x128xf32>
    %119 = math.absf %118 : vector<256x128xf32>
    %cst_51 = arith.constant 1.000000e+00 : f32
    %120 = vector.broadcast %cst_51 : f32 to vector<256x128xf32>
    %121 = arith.subf %120, %119 : vector<256x128xf32>
    %cst_52 = arith.constant 0.000000e+00 : f32
    %122 = vector.broadcast %cst_52 : f32 to vector<256x128xf32>
    %123 = arith.maximumf %121, %122 : vector<256x128xf32>
    %124 = arith.mulf %115, %123 : vector<256x128xf32>
    %cst_53 = arith.constant dense<0.000000e+00> : vector<4x128xf32>
    %125 = tpu.matmul %82, %124, %cst_53 {dimension_numbers = #tpu.dot_dimension_numbers<[1], [0], [0], [1], [0, 0, 1, 1], [], []>} : vector<4x256xf32>, vector<256x128xf32>, vector<4x128xf32> -> vector<4x128xf32>
    %c0_54 = arith.constant 0 : index
    %c4_55 = arith.constant 4 : index
    %c128_56 = arith.constant 128 : index
    %126 = vector.load %arg12[%c0_54, %c4_55, %c128_56] : memref<1x8x256xf32, #tpu.memory_space<vmem>>, vector<1x4x128xf32>
    %127 = vector.shape_cast %126 : vector<1x4x128xf32> to vector<4x128xf32>
    %128 = vector.shape_cast %125 : vector<4x128xf32> to vector<1x4x128xf32>
    tpu.vector_store %arg12[%c0_54, %c4_55, %c128_56], %128 {strides = array<i32>} : memref<1x8x256xf32, #tpu.memory_space<vmem>>, vector<1x4x128xf32>,
    return
  }
  func.func @transform_0(%arg0: i32) -> (i32, i32, i32) {
    %c0_i32 = arith.constant 0 : i32
    %c0_i32_0 = arith.constant 0 : i32
    %c0_i32_1 = arith.constant 0 : i32
    return %arg0, %c0_i32, %c0_i32_0 : i32, i32, i32
  }
  func.func @transform_1(%arg0: i32) -> (i32, i32) {
    %c0_i32 = arith.constant 0 : i32
    %c0_i32_0 = arith.constant 0 : i32
    %c0_i32_1 = arith.constant 0 : i32
    return %c0_i32, %c0_i32_0 : i32, i32
  }
  func.func @transform_2(%arg0: i32) -> (i32, i32) {
    %c0_i32 = arith.constant 0 : i32
    %c0_i32_0 = arith.constant 0 : i32
    %c0_i32_1 = arith.constant 0 : i32
    return %c0_i32, %c0_i32_0 : i32, i32
  }
  func.func @transform_3(%arg0: i32) -> (i32, i32) {
    %c0_i32 = arith.constant 0 : i32
    %c0_i32_0 = arith.constant 0 : i32
    %c0_i32_1 = arith.constant 0 : i32
    return %c0_i32, %c0_i32_0 : i32, i32
  }
  func.func @transform_4(%arg0: i32) -> (i32, i32) {
    %c0_i32 = arith.constant 0 : i32
    %c0_i32_0 = arith.constant 0 : i32
    %c0_i32_1 = arith.constant 0 : i32
    return %c0_i32, %c0_i32_0 : i32, i32
  }
  func.func @transform_5(%arg0: i32) -> (i32, i32) {
    %c0_i32 = arith.constant 0 : i32
    %c0_i32_0 = arith.constant 0 : i32
    %c0_i32_1 = arith.constant 0 : i32
    return %c0_i32, %c0_i32_0 : i32, i32
  }
  func.func @transform_6(%arg0: i32) -> (i32, i32) {
    %c0_i32 = arith.constant 0 : i32
    %c0_i32_0 = arith.constant 0 : i32
    %c0_i32_1 = arith.constant 0 : i32
    return %c0_i32, %c0_i32_0 : i32, i32
  }
  func.func @transform_7(%arg0: i32) -> (i32, i32) {
    %c0_i32 = arith.constant 0 : i32
    %c0_i32_0 = arith.constant 0 : i32
    %c0_i32_1 = arith.constant 0 : i32
    return %c0_i32, %c0_i32_0 : i32, i32
  }
  func.func @transform_8(%arg0: i32) -> (i32, i32) {
    %c0_i32 = arith.constant 0 : i32
    %c0_i32_0 = arith.constant 0 : i32
    %c0_i32_1 = arith.constant 0 : i32
    return %c0_i32, %c0_i32_0 : i32, i32
  }
  func.func @transform_9(%arg0: i32) -> (i32, i32) {
    %c0_i32 = arith.constant 0 : i32
    %c0_i32_0 = arith.constant 0 : i32
    %c0_i32_1 = arith.constant 0 : i32
    return %c0_i32, %c0_i32_0 : i32, i32
  }
  func.func @transform_10(%arg0: i32) -> (i32, i32) {
    %c0_i32 = arith.constant 0 : i32
    %c0_i32_0 = arith.constant 0 : i32
    %c0_i32_1 = arith.constant 0 : i32
    return %c0_i32, %c0_i32_0 : i32, i32
  }
  func.func @transform_11(%arg0: i32) -> (i32, i32, i32) {
    %c0_i32 = arith.constant 0 : i32
    %c0_i32_0 = arith.constant 0 : i32
    %c0_i32_1 = arith.constant 0 : i32
    return %arg0, %c0_i32, %c0_i32_0 : i32, i32, i32
  }
}

</mosaic_0001>

<llo_original>
// kernel: tpu_custom_call.1
$region0: #{tpu_custom_call.1}
  #allocation0 [shape = 'u32[]', space=smem, size = 0x4, offset = 0x4, fixed_abs, tag = 'smem constant byte address 0x4 - core index']
  #allocation1 [shape = 'u32[144,128]{1,0:T(1,128)}', space=vmem, size = 0x12000, scoped, tag = 'internal scratch']
  %s0 = inlined_call_operand.vmem [shape: f32[1,8,256], index: 0, kind: input, shape index: {}]
  %s1 = inlined_call_operand.vmem [shape: f32[256,36], index: 1, kind: input, shape index: {}]
  %s2 = inlined_call_operand.vmem [shape: f32[36,80], index: 2, kind: input, shape index: {}]
  %s3 = inlined_call_operand.vmem [shape: f32[8,80], index: 3, kind: input, shape index: {}]
  %s4 = inlined_call_operand.vmem [shape: f32[2,8], index: 4, kind: input, shape index: {}]
  %s5 = inlined_call_operand.vmem [shape: f32[80,20], index: 5, kind: input, shape index: {}]
  %s6 = inlined_call_operand.vmem [shape: f32[1,20], index: 6, kind: input, shape index: {}]
  %s7 = inlined_call_operand.vmem [shape: f32[20,6], index: 7, kind: input, shape index: {}]
  %s8 = inlined_call_operand.vmem [shape: f32[1,6], index: 8, kind: input, shape index: {}]
  %s9 = inlined_call_operand.vmem [shape: f32[6,512], index: 9, kind: input, shape index: {}]
  %s10 = inlined_call_operand.vmem [shape: f32[1,512], index: 10, kind: input, shape index: {}]
  %s11 = inlined_call_operand.hbm [shape: f32[1,8,256], index: 11, kind: output, shape index: {}]
  %s12 = sld [smem:[#allocation0]]
  $region54: #{tpu_custom_call.1} parent=0
    _
  %s14 = ssub.s32 1, %s12
  %s15 = scalar_select 0, %s14, %s12
  $region1: #{tpu_custom_call.1} parent=0
    #allocation2 [shape = 'u8[8192]{0}', space=vmem, size = 0x2000, scoped, tag = 'output window, operand 0, single buffered']
    #allocation3 [shape = 's32[1]{0}', space=sflag, size = 0x4, scoped, tag = 'scoped memory for tpu_custom_call.1']
    %16 = vsyncpa [#allocation3], 0
    // Predicated region
    $region2: #{tpu_custom_call.1} parent=1 // pred_check
      _
    $region3: #{tpu_custom_call.1} parent=1 // pred_check_branch
      %18 = sbr.rel (0) target = $region5
    $region4: #{tpu_custom_call.1} parent=1 // pred_region
      _
    $region5: #{tpu_custom_call.1} parent=1 // pred_fallthru
      _
    // Predicated region
    $region6: #{tpu_custom_call.1} parent=1 // pred_check
      _
    $region7: #{tpu_custom_call.1} parent=1 // pred_check_branch
      %20 = sbr.rel (0) target = $region9
    $region8: #{tpu_custom_call.1} parent=1 // pred_region
      _
    $region9: #{tpu_custom_call.1} parent=1 // pred_fallthru
      _
    // Predicated region
    $region10: #{tpu_custom_call.1} parent=1 // pred_check
      _
    $region11: #{tpu_custom_call.1} parent=1 // pred_check_branch
      %22 = sbr.rel (0) target = $region13
    $region12: #{tpu_custom_call.1} parent=1 // pred_region
      _
    $region13: #{tpu_custom_call.1} parent=1 // pred_fallthru
      _
    // Predicated region
    $region14: #{tpu_custom_call.1} parent=1 // pred_check
      _
    $region15: #{tpu_custom_call.1} parent=1 // pred_check_branch
      %24 = sbr.rel (0) target = $region17
    $region16: #{tpu_custom_call.1} parent=1 // pred_region
      _
    $region17: #{tpu_custom_call.1} parent=1 // pred_fallthru
      _
    // Predicated region
    $region18: #{tpu_custom_call.1} parent=1 // pred_check
      _
    $region19: #{tpu_custom_call.1} parent=1 // pred_check_branch
      %26 = sbr.rel (0) target = $region21
    $region20: #{tpu_custom_call.1} parent=1 // pred_region
      _
    $region21: #{tpu_custom_call.1} parent=1 // pred_fallthru
      _
    // Predicated region
    $region22: #{tpu_custom_call.1} parent=1 // pred_check
      _
    $region23: #{tpu_custom_call.1} parent=1 // pred_check_branch
      %28 = sbr.rel (0) target = $region25
    $region24: #{tpu_custom_call.1} parent=1 // pred_region
      _
    $region25: #{tpu_custom_call.1} parent=1 // pred_fallthru
      _
    // Predicated region
    $region26: #{tpu_custom_call.1} parent=1 // pred_check
      _
    $region27: #{tpu_custom_call.1} parent=1 // pred_check_branch
      %30 = sbr.rel (0) target = $region29
    $region28: #{tpu_custom_call.1} parent=1 // pred_region
      _
    $region29: #{tpu_custom_call.1} parent=1 // pred_fallthru
      _
    // Predicated region
    $region30: #{tpu_custom_call.1} parent=1 // pred_check
      _
    $region31: #{tpu_custom_call.1} parent=1 // pred_check_branch
      %32 = sbr.rel (0) target = $region33
    $region32: #{tpu_custom_call.1} parent=1 // pred_region
      _
    $region33: #{tpu_custom_call.1} parent=1 // pred_fallthru
      _
    // Predicated region
    $region34: #{tpu_custom_call.1} parent=1 // pred_check
      _
    $region35: #{tpu_custom_call.1} parent=1 // pred_check_branch
      %34 = sbr.rel (0) target = $region37
    $region36: #{tpu_custom_call.1} parent=1 // pred_region
      _
    $region37: #{tpu_custom_call.1} parent=1 // pred_fallthru
      _
    // Predicated region
    $region38: #{tpu_custom_call.1} parent=1 // pred_check
      _
    $region39: #{tpu_custom_call.1} parent=1 // pred_check_branch
      %36 = sbr.rel (0) target = $region41
    $region40: #{tpu_custom_call.1} parent=1 // pred_region
      _
    $region41: #{tpu_custom_call.1} parent=1 // pred_fallthru
      _
    // Predicated region
    $region42: #{tpu_custom_call.1} parent=1 // pred_check
      _
    $region43: #{tpu_custom_call.1} parent=1 // pred_check_branch
      %38 = sbr.rel (0) target = $region45
    $region44: #{tpu_custom_call.1} parent=1 // pred_region
      _
    $region45: #{tpu_custom_call.1} parent=1 // pred_fallthru
      _
    %v39 = vld [vmem:[%s0] sm:$0xff]
    %v40 = vld [vmem:[%s0 + $0x8] sm:$0xff]
    %v41 = vld [vmem:[%s1] sm:$0xff]
    %v42 = vld [vmem:[%s1 + $0x8] sm:$0xff]
    %v43 = vld [vmem:[%s1 + $0x10] sm:$0xff]
    %v44 = vld [vmem:[%s1 + $0x18] sm:$0xff]
    %v45 = vld [vmem:[%s1 + $0x20] sm:$0xff]
    %v46 = vld [vmem:[%s1 + $0x28] sm:$0xff]
    %v47 = vld [vmem:[%s1 + $0x30] sm:$0xff]
    %v48 = vld [vmem:[%s1 + $0x38] sm:$0xff]
    %v49 = vld [vmem:[%s1 + $0x40] sm:$0xff]
    %v50 = vld [vmem:[%s1 + $0x48] sm:$0xff]
    %v51 = vld [vmem:[%s1 + $0x50] sm:$0xff]
    %v52 = vld [vmem:[%s1 + $0x58] sm:$0xff]
    %v53 = vld [vmem:[%s1 + $0x60] sm:$0xff]
    %v54 = vld [vmem:[%s1 + $0x68] sm:$0xff]
    %v55 = vld [vmem:[%s1 + $0x70] sm:$0xff]
    %v56 = vld [vmem:[%s1 + $0x78] sm:$0xff]
    %v57 = vld [vmem:[%s1 + $0x80] sm:$0xff]
    %v58 = vld [vmem:[%s1 + $0x88] sm:$0xff]
    %v59 = vld [vmem:[%s1 + $0x90] sm:$0xff]
    %v60 = vld [vmem:[%s1 + $0x98] sm:$0xff]
    %v61 = vld [vmem:[%s1 + $0xa0] sm:$0xff]
    %v62 = vld [vmem:[%s1 + $0xa8] sm:$0xff]
    %v63 = vld [vmem:[%s1 + $0xb0] sm:$0xff]
    %v64 = vld [vmem:[%s1 + $0xb8] sm:$0xff]
    %v65 = vld [vmem:[%s1 + $0xc0] sm:$0xff]
    %v66 = vld [vmem:[%s1 + $0xc8] sm:$0xff]
    %v67 = vld [vmem:[%s1 + $0xd0] sm:$0xff]
    %v68 = vld [vmem:[%s1 + $0xd8] sm:$0xff]
    %v69 = vld [vmem:[%s1 + $0xe0] sm:$0xff]
    %v70 = vld [vmem:[%s1 + $0xe8] sm:$0xff]
    %v71 = vld [vmem:[%s1 + $0xf0] sm:$0xff]
    %v72 = vld [vmem:[%s1 + $0xf8] sm:$0xff]
    %73 = vmatprep.subr.mxu0 0.0
    %74 = vmatpush1.msra.mxu0 %v41
    %75 = vmatprep.subr.mxu0 0.0
    %76 = vmatpush1.msra.mxu0 %v42
    %77 = vmatprep.subr.mxu0 0.0
    %78 = vmatpush1.msra.mxu0 %v43
    %79 = vmatprep.subr.mxu0 0.0
    %80 = vmatpush1.msra.mxu0 %v44
    %81 = vmatprep.subr.mxu0 0.0
    %82 = vmatpush1.msra.mxu0 %v45
    %83 = vmatprep.subr.mxu0 0.0
    %84 = vmatpush1.msra.mxu0 %v46
    %85 = vmatprep.subr.mxu0 0.0
    %86 = vmatpush1.msra.mxu0 %v47
    %87 = vmatprep.subr.mxu0 0.0
    %88 = vmatpush1.msra.mxu0 %v48
    %89 = vmatprep.subr.mxu0 0.0
    %90 = vmatpush1.msra.mxu0 %v49
    %91 = vmatprep.subr.mxu0 0.0
    %92 = vmatpush1.msra.mxu0 %v50
    %93 = vmatprep.subr.mxu0 0.0
    %94 = vmatpush1.msra.mxu0 %v51
    %95 = vmatprep.subr.mxu0 0.0
    %96 = vmatpush1.msra.mxu0 %v52
    %97 = vmatprep.subr.mxu0 0.0
    %98 = vmatpush1.msra.mxu0 %v53
    %99 = vmatprep.subr.mxu0 0.0
    %100 = vmatpush1.msra.mxu0 %v54
    %101 = vmatprep.subr.mxu0 0.0
    %102 = vmatpush1.msra.mxu0 %v55
    %103 = vmatprep.subr.mxu0 0.0
    %104 = vmatpush1.msra.mxu0 %v56
    %105 = vmatprep.subr.mxu0 0.0
    %106 = vmatpush1.msra.mxu0 %v57
    %107 = vmatprep.subr.mxu0 0.0
    %108 = vmatpush1.msra.mxu0 %v58
    %109 = vmatprep.subr.mxu0 0.0
    %110 = vmatpush1.msra.mxu0 %v59
    %111 = vmatprep.subr.mxu0 0.0
    %112 = vmatpush1.msra.mxu0 %v60
    %113 = vmatprep.subr.mxu0 0.0
    %114 = vmatpush1.msra.mxu0 %v61
    %115 = vmatprep.subr.mxu0 0.0
    %116 = vmatpush1.msra.mxu0 %v62
    %117 = vmatprep.subr.mxu0 0.0
    %118 = vmatpush1.msra.mxu0 %v63
    %119 = vmatprep.subr.mxu0 0.0
    %120 = vmatpush1.msra.mxu0 %v64
    %121 = vmatprep.subr.mxu0 0.0
    %122 = vmatpush1.msra.mxu0 %v65
    %123 = vmatprep.subr.mxu0 0.0
    %124 = vmatpush1.msra.mxu0 %v66
    %125 = vmatprep.subr.mxu0 0.0
    %126 = vmatpush1.msra.mxu0 %v67
    %127 = vmatprep.subr.mxu0 0.0
    %128 = vmatpush1.msra.mxu0 %v68
    %129 = vmatprep.subr.mxu0 0.0
    %130 = vmatpush1.msra.mxu0 %v69
    %131 = vmatprep.subr.mxu0 0.0
    %132 = vmatpush1.msra.mxu0 %v70
    %133 = vmatprep.subr.mxu0 0.0
    %134 = vmatpush1.msra.mxu0 %v71
    %135 = vmatprep.subr.mxu0 0.0
    %136 = vmatpush1.msra.mxu0 %v72
    %137 = vmatprep.mubr.f32.mxu0 %v40
    %138 = vmatmul.mubr.f32.gmra.mrb[0].mxu0 %v39
    %v139 = vpop.f32.mrb[0].mxu0
    %v140 = vadd.f32 0.0, %v139
    %v141 = vpop.f32.mrb[0].mxu0
    %142 = vdwg.mxu0
    %v143 = vld [vmem:[%s2] sm:$0xff]
    %v144 = vld [vmem:[%s2 + $0x8] sm:$0xff]
    %v145 = vld [vmem:[%s2 + $0x10] sm:$0xff]
    %v146 = vld [vmem:[%s2 + $0x18] sm:$0xff]
    %v147 = vld [vmem:[%s2 + $0x20] sm:$0xf]
    %vm148 = vcmask 293888
    %v150 = vsel %vm148, %v140, 0
    %vm152 = vcmask 1043456
    %v154 = vsel %vm152, %v147, 0
    %156 = vmatprep.subr.mxu0 0.0
    %157 = vmatpush1.msra.mxu0 %v143
    %158 = vmatprep.subr.mxu0 0.0
    %159 = vmatpush1.msra.mxu0 %v144
    %160 = vmatprep.subr.mxu0 0.0
    %161 = vmatpush1.msra.mxu0 %v145
    %162 = vmatprep.subr.mxu0 0.0
    %163 = vmatpush1.msra.mxu0 %v146
    %164 = vmatprep.subr.mxu0 0.0
    %165 = vmatpush1.msra.mxu0 %v154
    %166 = vmatprep.subr.mxu0 0.0
    %167 = vmatpush1.msra.mxu0 0.0
    %168 = vmatprep.subr.mxu0 0.0
    %169 = vmatpush1.msra.mxu0 0.0
    %170 = vmatprep.subr.mxu0 0.0
    %171 = vmatpush1.msra.mxu0 0.0
    %172 = vmatprep.subr.mxu0 0.0
    %173 = vmatpush1.msra.mxu0 0.0
    %174 = vmatprep.subr.mxu0 0.0
    %175 = vmatpush1.msra.mxu0 0.0
    %176 = vmatprep.subr.mxu0 0.0
    %177 = vmatpush1.msra.mxu0 0.0
    %178 = vmatprep.subr.mxu0 0.0
    %179 = vmatpush1.msra.mxu0 0.0
    %180 = vmatprep.subr.mxu0 0.0
    %181 = vmatpush1.msra.mxu0 0.0
    %182 = vmatprep.subr.mxu0 0.0
    %183 = vmatpush1.msra.mxu0 0.0
    %184 = vmatprep.subr.mxu0 0.0
    %185 = vmatpush1.msra.mxu0 0.0
    %186 = vmatprep.subr.mxu0 0.0
    %187 = vmatpush1.msra.mxu0 0.0
    %188 = vmatprep.subr.mxu0 0.0
    %189 = vmatpush1.msra.mxu0 0.0
    %190 = vmatprep.subr.mxu0 0.0
    %191 = vmatpush1.msra.mxu0 0.0
    %192 = vmatprep.subr.mxu0 0.0
    %193 = vmatpush1.msra.mxu0 0.0
    %194 = vmatprep.subr.mxu0 0.0
    %195 = vmatpush1.msra.mxu0 0.0
    %196 = vmatprep.subr.mxu0 0.0
    %197 = vmatpush1.msra.mxu0 0.0
    %198 = vmatprep.subr.mxu0 0.0
    %199 = vmatpush1.msra.mxu0 0.0
    %200 = vmatprep.subr.mxu0 0.0
    %201 = vmatpush1.msra.mxu0 0.0
    %202 = vmatprep.subr.mxu0 0.0
    %203 = vmatpush1.msra.mxu0 0.0
    %204 = vmatprep.subr.mxu0 0.0
    %205 = vmatpush1.msra.mxu0 0.0
    %206 = vmatprep.subr.mxu0 0.0
    %207 = vmatpush1.msra.mxu0 0.0
    %208 = vmatprep.subr.mxu0 0.0
    %209 = vmatpush1.msra.mxu0 0.0
    %210 = vmatprep.subr.mxu0 0.0
    %211 = vmatpush1.msra.mxu0 0.0
    %212 = vmatprep.subr.mxu0 0.0
    %213 = vmatpush1.msra.mxu0 0.0
    %214 = vmatprep.subr.mxu0 0.0
    %215 = vmatpush1.msra.mxu0 0.0
    %216 = vmatprep.subr.mxu0 0.0
    %217 = vmatpush1.msra.mxu0 0.0
    %218 = vmatprep.subr.mxu0 0.0
    %219 = vmatpush1.msra.mxu0 0.0
    %220 = vmatprep.mubr.f32.mxu0 0.0
    %221 = vmatmul.mubr.f32.gmra.mrb[0].mxu0 %v150
    %v222 = vpop.f32.mrb[0].mxu0
    %v223 = vadd.f32 0.0, %v222
    %v224 = vpop.f32.mrb[0].mxu0
    %225 = vdwg.mxu0
    %v226 = vld [vmem:[%s3] sm:$0xff]
    %v227 = vmul.f32 %v223, %v226
    %v228 = vld [vmem:[%s4] sm:$0x3]
    %vm229 = vcmask 64512
    %v231 = vsel %vm229, %v228, 0
    %233 = vmatprep.subr.mxu0 0.0
    %234 = vmatpush1.msra.mxu0 %v227
    %235 = vmatprep.subr.mxu0 0.0
    %236 = vmatpush1.msra.mxu0 0.0
    %237 = vmatprep.subr.mxu0 0.0
    %238 = vmatpush1.msra.mxu0 0.0
    %239 = vmatprep.subr.mxu0 0.0
    %240 = vmatpush1.msra.mxu0 0.0
    %241 = vmatprep.subr.mxu0 0.0
    %242 = vmatpush1.msra.mxu0 0.0
    %243 = vmatprep.subr.mxu0 0.0
    %244 = vmatpush1.msra.mxu0 0.0
    %245 = vmatprep.subr.mxu0 0.0
    %246 = vmatpush1.msra.mxu0 0.0
    %247 = vmatprep.subr.mxu0 0.0
    %248 = vmatpush1.msra.mxu0 0.0
    %249 = vmatprep.subr.mxu0 0.0
    %250 = vmatpush1.msra.mxu0 0.0
    %251 = vmatprep.subr.mxu0 0.0
    %252 = vmatpush1.msra.mxu0 0.0
    %253 = vmatprep.subr.mxu0 0.0
    %254 = vmatpush1.msra.mxu0 0.0
    %255 = vmatprep.subr.mxu0 0.0
    %256 = vmatpush1.msra.mxu0 0.0
    %257 = vmatprep.subr.mxu0 0.0
    %258 = vmatpush1.msra.mxu0 0.0
    %259 = vmatprep.subr.mxu0 0.0
    %260 = vmatpush1.msra.mxu0 0.0
    %261 = vmatprep.subr.mxu0 0.0
    %262 = vmatpush1.msra.mxu0 0.0
    %263 = vmatprep.subr.mxu0 0.0
    %264 = vmatpush1.msra.mxu0 0.0
    %265 = vmatprep.subr.mxu0 0.0
    %266 = vmatpush1.msra.mxu0 0.0
    %267 = vmatprep.subr.mxu0 0.0
    %268 = vmatpush1.msra.mxu0 0.0
    %269 = vmatprep.subr.mxu0 0.0
    %270 = vmatpush1.msra.mxu0 0.0
    %271 = vmatprep.subr.mxu0 0.0
    %272 = vmatpush1.msra.mxu0 0.0
    %273 = vmatprep.subr.mxu0 0.0
    %274 = vmatpush1.msra.mxu0 0.0
    %275 = vmatprep.subr.mxu0 0.0
    %276 = vmatpush1.msra.mxu0 0.0
    %277 = vmatprep.subr.mxu0 0.0
    %278 = vmatpush1.msra.mxu0 0.0
    %279 = vmatprep.subr.mxu0 0.0
    %280 = vmatpush1.msra.mxu0 0.0
    %281 = vmatprep.subr.mxu0 0.0
    %282 = vmatpush1.msra.mxu0 0.0
    %283 = vmatprep.subr.mxu0 0.0
    %284 = vmatpush1.msra.mxu0 0.0
    %285 = vmatprep.subr.mxu0 0.0
    %286 = vmatpush1.msra.mxu0 0.0
    %287 = vmatprep.subr.mxu0 0.0
    %288 = vmatpush1.msra.mxu0 0.0
    %289 = vmatprep.subr.mxu0 0.0
    %290 = vmatpush1.msra.mxu0 0.0
    %291 = vmatprep.subr.mxu0 0.0
    %292 = vmatpush1.msra.mxu0 0.0
    %293 = vmatprep.subr.mxu0 0.0
    %294 = vmatpush1.msra.mxu0 0.0
    %295 = vmatprep.subr.mxu0 0.0
    %296 = vmatpush1.msra.mxu0 0.0
    %297 = vmatprep.mubr.f32.mxu0 0.0
    %298 = vmatmul.mubr.f32.gmra.mrb[0].mxu0 %v231
    %v299 = vpop.f32.mrb[0].mxu0
    %v300 = vadd.f32 0.0, %v299
    %v301 = vpop.f32.mrb[0].mxu0
    %302 = vdwg.mxu0
    %v303 = vld [vmem:[%s5] sm:$0xff]
    %v304 = vld [vmem:[%s5 + $0x8] sm:$0xff]
    %v305 = vld [vmem:[%s5 + $0x10] sm:$0xff]
    %v306 = vld [vmem:[%s5 + $0x18] sm:$0xff]
    %v307 = vld [vmem:[%s5 + $0x20] sm:$0xff]
    %v308 = vld [vmem:[%s5 + $0x28] sm:$0xff]
    %v309 = vld [vmem:[%s5 + $0x30] sm:$0xff]
    %v310 = vld [vmem:[%s5 + $0x38] sm:$0xff]
    %v311 = vld [vmem:[%s5 + $0x40] sm:$0xff]
    %v312 = vld [vmem:[%s5 + $0x48] sm:$0xff]
    %v313 = vld [vmem:[%s6] sm:$0x1]
    %v315 = vlaneseq
    %v316 = vshrl.u32 %v315, 7
    %v317 = vsub.s32 0, %v316
    %v318 = vrot.slane %v313, %v317
    %vm320 = vcmask 654336
    %v322 = vsel %vm320, %v300, 0
    %324 = vmatprep.subr.mxu0 0.0
    %325 = vmatpush1.msra.mxu0 %v303
    %326 = vmatprep.subr.mxu0 0.0
    %327 = vmatpush1.msra.mxu0 %v304
    %328 = vmatprep.subr.mxu0 0.0
    %329 = vmatpush1.msra.mxu0 %v305
    %330 = vmatprep.subr.mxu0 0.0
    %331 = vmatpush1.msra.mxu0 %v306
    %332 = vmatprep.subr.mxu0 0.0
    %333 = vmatpush1.msra.mxu0 %v307
    %334 = vmatprep.subr.mxu0 0.0
    %335 = vmatpush1.msra.mxu0 %v308
    %336 = vmatprep.subr.mxu0 0.0
    %337 = vmatpush1.msra.mxu0 %v309
    %338 = vmatprep.subr.mxu0 0.0
    %339 = vmatpush1.msra.mxu0 %v310
    %340 = vmatprep.subr.mxu0 0.0
    %341 = vmatpush1.msra.mxu0 %v311
    %342 = vmatprep.subr.mxu0 0.0
    %343 = vmatpush1.msra.mxu0 %v312
    %344 = vmatprep.subr.mxu0 0.0
    %345 = vmatpush1.msra.mxu0 0.0
    %346 = vmatprep.subr.mxu0 0.0
    %347 = vmatpush1.msra.mxu0 0.0
    %348 = vmatprep.subr.mxu0 0.0
    %349 = vmatpush1.msra.mxu0 0.0
    %350 = vmatprep.subr.mxu0 0.0
    %351 = vmatpush1.msra.mxu0 0.0
    %352 = vmatprep.subr.mxu0 0.0
    %353 = vmatpush1.msra.mxu0 0.0
    %354 = vmatprep.subr.mxu0 0.0
    %355 = vmatpush1.msra.mxu0 0.0
    %356 = vmatprep.subr.mxu0 0.0
    %357 = vmatpush1.msra.mxu0 0.0
    %358 = vmatprep.subr.mxu0 0.0
    %359 = vmatpush1.msra.mxu0 0.0
    %360 = vmatprep.subr.mxu0 0.0
    %361 = vmatpush1.msra.mxu0 0.0
    %362 = vmatprep.subr.mxu0 0.0
    %363 = vmatpush1.msra.mxu0 0.0
    %364 = vmatprep.subr.mxu0 0.0
    %365 = vmatpush1.msra.mxu0 0.0
    %366 = vmatprep.subr.mxu0 0.0
    %367 = vmatpush1.msra.mxu0 0.0
    %368 = vmatprep.subr.mxu0 0.0
    %369 = vmatpush1.msra.mxu0 0.0
    %370 = vmatprep.subr.mxu0 0.0
    %371 = vmatpush1.msra.mxu0 0.0
    %372 = vmatprep.subr.mxu0 0.0
    %373 = vmatpush1.msra.mxu0 0.0
    %374 = vmatprep.subr.mxu0 0.0
    %375 = vmatpush1.msra.mxu0 0.0
    %376 = vmatprep.subr.mxu0 0.0
    %377 = vmatpush1.msra.mxu0 0.0
    %378 = vmatprep.subr.mxu0 0.0
    %379 = vmatpush1.msra.mxu0 0.0
    %380 = vmatprep.subr.mxu0 0.0
    %381 = vmatpush1.msra.mxu0 0.0
    %382 = vmatprep.subr.mxu0 0.0
    %383 = vmatpush1.msra.mxu0 0.0
    %384 = vmatprep.subr.mxu0 0.0
    %385 = vmatpush1.msra.mxu0 0.0
    %386 = vmatprep.subr.mxu0 0.0
    %387 = vmatpush1.msra.mxu0 0.0
    %388 = vmatprep.mubr.f32.mxu0 0.0
    %389 = vmatmul.mubr.f32.gmra.mrb[0].mxu0 %v322
    %v390 = vpop.f32.mrb[0].mxu0
    %v391 = vadd.f32 %v318, %v390
    %v392 = vpop.f32.mrb[0].mxu0
    %393 = vdwg.mxu0
    %v394 = vtanh.pop %v391
    %v395 = vld [vmem:[%s7] sm:$0xff]
    %v396 = vld [vmem:[%s7 + $0x8] sm:$0xff]
    %v397 = vld [vmem:[%s7 + $0x10] sm:$0xf]
    %v398 = vld [vmem:[%s8] sm:$0x1]
    %v400 = vlaneseq
    %v401 = vshrl.u32 %v400, 7
    %v402 = vsub.s32 0, %v401
    %v403 = vrot.slane %v398, %v402
    %vm405 = vcmask 162816
    %v407 = vsel %vm405, %v394, 0
    %v410 = vsel %vm152, %v397, 0
    %412 = vmatprep.subr.mxu0 0.0
    %413 = vmatpush1.msra.mxu0 %v395
    %414 = vmatprep.subr.mxu0 0.0
    %415 = vmatpush1.msra.mxu0 %v396
    %416 = vmatprep.subr.mxu0 0.0
    %417 = vmatpush1.msra.mxu0 %v410
    %418 = vmatprep.subr.mxu0 0.0
    %419 = vmatpush1.msra.mxu0 0.0
    %420 = vmatprep.subr.mxu0 0.0
    %421 = vmatpush1.msra.mxu0 0.0
    %422 = vmatprep.subr.mxu0 0.0
    %423 = vmatpush1.msra.mxu0 0.0
    %424 = vmatprep.subr.mxu0 0.0
    %425 = vmatpush1.msra.mxu0 0.0
    %426 = vmatprep.subr.mxu0 0.0
    %427 = vmatpush1.msra.mxu0 0.0
    %428 = vmatprep.subr.mxu0 0.0
    %429 = vmatpush1.msra.mxu0 0.0
    %430 = vmatprep.subr.mxu0 0.0
    %431 = vmatpush1.msra.mxu0 0.0
    %432 = vmatprep.subr.mxu0 0.0
    %433 = vmatpush1.msra.mxu0 0.0
    %434 = vmatprep.subr.mxu0 0.0
    %435 = vmatpush1.msra.mxu0 0.0
    %436 = vmatprep.subr.mxu0 0.0
    %437 = vmatpush1.msra.mxu0 0.0
    %438 = vmatprep.subr.mxu0 0.0
    %439 = vmatpush1.msra.mxu0 0.0
    %440 = vmatprep.subr.mxu0 0.0
    %441 = vmatpush1.msra.mxu0 0.0
    %442 = vmatprep.subr.mxu0 0.0
    %443 = vmatpush1.msra.mxu0 0.0
    %444 = vmatprep.subr.mxu0 0.0
    %445 = vmatpush1.msra.mxu0 0.0
    %446 = vmatprep.subr.mxu0 0.0
    %447 = vmatpush1.msra.mxu0 0.0
    %448 = vmatprep.subr.mxu0 0.0
    %449 = vmatpush1.msra.mxu0 0.0
    %450 = vmatprep.subr.mxu0 0.0
    %451 = vmatpush1.msra.mxu0 0.0
    %452 = vmatprep.subr.mxu0 0.0
    %453 = vmatpush1.msra.mxu0 0.0
    %454 = vmatprep.subr.mxu0 0.0
    %455 = vmatpush1.msra.mxu0 0.0
    %456 = vmatprep.subr.mxu0 0.0
    %457 = vmatpush1.msra.mxu0 0.0
    %458 = vmatprep.subr.mxu0 0.0
    %459 = vmatpush1.msra.mxu0 0.0
    %460 = vmatprep.subr.mxu0 0.0
    %461 = vmatpush1.msra.mxu0 0.0
    %462 = vmatprep.subr.mxu0 0.0
    %463 = vmatpush1.msra.mxu0 0.0
    %464 = vmatprep.subr.mxu0 0.0
    %465 = vmatpush1.msra.mxu0 0.0
    %466 = vmatprep.subr.mxu0 0.0
    %467 = vmatpush1.msra.mxu0 0.0
    %468 = vmatprep.subr.mxu0 0.0
    %469 = vmatpush1.msra.mxu0 0.0
    %470 = vmatprep.subr.mxu0 0.0
    %471 = vmatpush1.msra.mxu0 0.0
    %472 = vmatprep.subr.mxu0 0.0
    %473 = vmatpush1.msra.mxu0 0.0
    %474 = vmatprep.subr.mxu0 0.0
    %475 = vmatpush1.msra.mxu0 0.0
    %476 = vmatprep.mubr.f32.mxu0 0.0
    %477 = vmatmul.mubr.f32.gmra.mrb[0].mxu0 %v407
    %v478 = vpop.f32.mrb[0].mxu0
    %v479 = vadd.f32 %v403, %v478
    %v480 = vpop.f32.mrb[0].mxu0
    %481 = vdwg.mxu0
    %v482 = vtanh.pop %v479
    %v483 = vtanh.pop %v482
    %v484 = vld [vmem:[%s9] sm:$0x3f]
    %v485 = vld [vmem:[%s9 + $0x8] sm:$0x3f]
    %v486 = vld [vmem:[%s9 + $0x10] sm:$0x3f]
    %v487 = vld [vmem:[%s9 + $0x18] sm:$0x3f]
    %v488 = vld [vmem:[%s10] sm:$0xf]
    %v490 = vlaneseq
    %v491 = vshrl.u32 %v490, 7
    %v492 = vsub.s32 0, %v491
    %v493 = vrot.slane %v488, %v492
    %v494 = vlaneseq
    %v495 = vshrl.u32 %v494, 7
    %v496 = vsub.s32 1, %v495
    %v497 = vrot.slane %v488, %v496
    %v498 = vlaneseq
    %v499 = vshrl.u32 %v498, 7
    %v500 = vsub.s32 2, %v499
    %v501 = vrot.slane %v488, %v500
    %v502 = vlaneseq
    %v503 = vshrl.u32 %v502, 7
    %v504 = vsub.s32 3, %v503
    %v505 = vrot.slane %v488, %v504
    %vm510 = vcmask 48128
    %v512 = vsel %vm510, %v483, 0
    %vm514 = vcmask 1045504
    %v516 = vsel %vm514, %v484, 0
    %v519 = vsel %vm514, %v485, 0
    %v522 = vsel %vm514, %v486, 0
    %v525 = vsel %vm514, %v487, 0
    %527 = vmatprep.subr.mxu0 %v519
    %528 = vmatpush1.msra.mxu0 %v516
    %529 = vmatprep.subr.mxu0 0.0
    %530 = vmatpush1.msra.mxu0 0.0
    %531 = vmatprep.subr.mxu0 0.0
    %532 = vmatpush1.msra.mxu0 0.0
    %533 = vmatprep.subr.mxu0 0.0
    %534 = vmatpush1.msra.mxu0 0.0
    %535 = vmatprep.subr.mxu0 0.0
    %536 = vmatpush1.msra.mxu0 0.0
    %537 = vmatprep.subr.mxu0 0.0
    %538 = vmatpush1.msra.mxu0 0.0
    %539 = vmatprep.subr.mxu0 0.0
    %540 = vmatpush1.msra.mxu0 0.0
    %541 = vmatprep.subr.mxu0 0.0
    %542 = vmatpush1.msra.mxu0 0.0
    %543 = vmatprep.subr.mxu0 0.0
    %544 = vmatpush1.msra.mxu0 0.0
    %545 = vmatprep.subr.mxu0 0.0
    %546 = vmatpush1.msra.mxu0 0.0
    %547 = vmatprep.subr.mxu0 0.0
    %548 = vmatpush1.msra.mxu0 0.0
    %549 = vmatprep.subr.mxu0 0.0
    %550 = vmatpush1.msra.mxu0 0.0
    %551 = vmatprep.subr.mxu0 0.0
    %552 = vmatpush1.msra.mxu0 0.0
    %553 = vmatprep.subr.mxu0 0.0
    %554 = vmatpush1.msra.mxu0 0.0
    %555 = vmatprep.subr.mxu0 0.0
    %556 = vmatpush1.msra.mxu0 0.0
    %557 = vmatprep.subr.mxu0 0.0
    %558 = vmatpush1.msra.mxu0 0.0
    %559 = vmatprep.subr.mxu0 0.0
    %560 = vmatpush1.msra.mxu0 0.0
    %561 = vmatprep.subr.mxu0 0.0
    %562 = vmatpush1.msra.mxu0 0.0
    %563 = vmatprep.subr.mxu0 0.0
    %564 = vmatpush1.msra.mxu0 0.0
    %565 = vmatprep.subr.mxu0 0.0
    %566 = vmatpush1.msra.mxu0 0.0
    %567 = vmatprep.subr.mxu0 0.0
    %568 = vmatpush1.msra.mxu0 0.0
    %569 = vmatprep.subr.mxu0 0.0
    %570 = vmatpush1.msra.mxu0 0.0
    %571 = vmatprep.subr.mxu0 0.0
    %572 = vmatpush1.msra.mxu0 0.0
    %573 = vmatprep.subr.mxu0 0.0
    %574 = vmatpush1.msra.mxu0 0.0
    %575 = vmatprep.subr.mxu0 0.0
    %576 = vmatpush1.msra.mxu0 0.0
    %577 = vmatprep.subr.mxu0 0.0
    %578 = vmatpush1.msra.mxu0 0.0
    %579 = vmatprep.subr.mxu0 0.0
    %580 = vmatpush1.msra.mxu0 0.0
    %581 = vmatprep.subr.mxu0 0.0
    %582 = vmatpush1.msra.mxu0 0.0
    %583 = vmatprep.subr.mxu0 0.0
    %584 = vmatpush1.msra.mxu0 0.0
    %585 = vmatprep.subr.mxu0 0.0
    %586 = vmatpush1.msra.mxu0 0.0
    %587 = vmatprep.subr.mxu0 0.0
    %588 = vmatpush1.msra.mxu0 0.0
    %589 = vmatprep.subr.mxu0 0.0
    %590 = vmatpush1.msra.mxu0 0.0
    %591 = vmatprep.mubr.f32.mxu0 0.0
    %592 = vmatmul.mubr.f32.gmra.mrb[0].mxu0 %v512
    %v593 = vpop.f32.mrb[0].mxu0
    %v594 = vadd.f32 %v493, %v593
    %v595 = vpop.f32.mrb[0].mxu0
    %v596 = vadd.f32 %v497, %v595
    %597 = vdwg.mxu0
    %598 = vmatprep.subr.mxu0 %v525
    %599 = vmatpush1.msra.mxu0 %v522
    %600 = vmatprep.subr.mxu0 0.0
    %601 = vmatpush1.msra.mxu0 0.0
    %602 = vmatprep.subr.mxu0 0.0
    %603 = vmatpush1.msra.mxu0 0.0
    %604 = vmatprep.subr.mxu0 0.0
    %605 = vmatpush1.msra.mxu0 0.0
    %606 = vmatprep.subr.mxu0 0.0
    %607 = vmatpush1.msra.mxu0 0.0
    %608 = vmatprep.subr.mxu0 0.0
    %609 = vmatpush1.msra.mxu0 0.0
    %610 = vmatprep.subr.mxu0 0.0
    %611 = vmatpush1.msra.mxu0 0.0
    %612 = vmatprep.subr.mxu0 0.0
    %613 = vmatpush1.msra.mxu0 0.0
    %614 = vmatprep.subr.mxu0 0.0
    %615 = vmatpush1.msra.mxu0 0.0
    %616 = vmatprep.subr.mxu0 0.0
    %617 = vmatpush1.msra.mxu0 0.0
    %618 = vmatprep.subr.mxu0 0.0
    %619 = vmatpush1.msra.mxu0 0.0
    %620 = vmatprep.subr.mxu0 0.0
    %621 = vmatpush1.msra.mxu0 0.0
    %622 = vmatprep.subr.mxu0 0.0
    %623 = vmatpush1.msra.mxu0 0.0
    %624 = vmatprep.subr.mxu0 0.0
    %625 = vmatpush1.msra.mxu0 0.0
    %626 = vmatprep.subr.mxu0 0.0
    %627 = vmatpush1.msra.mxu0 0.0
    %628 = vmatprep.subr.mxu0 0.0
    %629 = vmatpush1.msra.mxu0 0.0
    %630 = vmatprep.subr.mxu0 0.0
    %631 = vmatpush1.msra.mxu0 0.0
    %632 = vmatprep.subr.mxu0 0.0
    %633 = vmatpush1.msra.mxu0 0.0
    %634 = vmatprep.subr.mxu0 0.0
    %635 = vmatpush1.msra.mxu0 0.0
    %636 = vmatprep.subr.mxu0 0.0
    %637 = vmatpush1.msra.mxu0 0.0
    %638 = vmatprep.subr.mxu0 0.0
    %639 = vmatpush1.msra.mxu0 0.0
    %640 = vmatprep.subr.mxu0 0.0
    %641 = vmatpush1.msra.mxu0 0.0
    %642 = vmatprep.subr.mxu0 0.0
    %643 = vmatpush1.msra.mxu0 0.0
    %644 = vmatprep.subr.mxu0 0.0
    %645 = vmatpush1.msra.mxu0 0.0
    %646 = vmatprep.subr.mxu0 0.0
    %647 = vmatpush1.msra.mxu0 0.0
    %648 = vmatprep.subr.mxu0 0.0
    %649 = vmatpush1.msra.mxu0 0.0
    %650 = vmatprep.subr.mxu0 0.0
    %651 = vmatpush1.msra.mxu0 0.0
    %652 = vmatprep.subr.mxu0 0.0
    %653 = vmatpush1.msra.mxu0 0.0
    %654 = vmatprep.subr.mxu0 0.0
    %655 = vmatpush1.msra.mxu0 0.0
    %656 = vmatprep.subr.mxu0 0.0
    %657 = vmatpush1.msra.mxu0 0.0
    %658 = vmatprep.subr.mxu0 0.0
    %659 = vmatpush1.msra.mxu0 0.0
    %660 = vmatprep.subr.mxu0 0.0
    %661 = vmatpush1.msra.mxu0 0.0
    %662 = vmatprep.mubr.f32.mxu0 0.0
    %663 = vmatmul.mubr.f32.gmra.mrb[0].mxu0 %v512
    %v664 = vpop.f32.mrb[0].mxu0
    %v665 = vadd.f32 %v501, %v664
    %v666 = vpop.f32.mrb[0].mxu0
    %v667 = vadd.f32 %v505, %v666
    %668 = vdwg.mxu0
    %v669 = vlaneseq
    %v670 = vshrl.u32 %v669, 7
    %v671 = vadd.s32 %v670, 8
    %v672 = vadd.s32 %v670, 16
    %v673 = vadd.s32 %v670, 24
    %v674 = vadd.s32 %v670, 32
    %v675 = vadd.s32 %v670, 40
    %v676 = vadd.s32 %v670, 48
    %v677 = vadd.s32 %v670, 56
    %v678 = vadd.s32 %v670, 64
    %v679 = vadd.s32 %v670, 72
    %v680 = vadd.s32 %v670, 80
    %v681 = vadd.s32 %v670, 88
    %v682 = vadd.s32 %v670, 96
    %v683 = vadd.s32 %v670, 104
    %v684 = vadd.s32 %v670, 112
    %v685 = vadd.s32 %v670, 120
    %v686 = vadd.s32 %v670, 128
    %v687 = vadd.s32 %v670, 136
    %v688 = vadd.s32 %v670, 144
    %v689 = vadd.s32 %v670, 152
    %v690 = vadd.s32 %v670, 160
    %v691 = vadd.s32 %v670, 168
    %v692 = vadd.s32 %v670, 176
    %v693 = vadd.s32 %v670, 184
    %v694 = vadd.s32 %v670, 192
    %v695 = vadd.s32 %v670, 200
    %v696 = vadd.s32 %v670, 208
    %v697 = vadd.s32 %v670, 216
    %v698 = vadd.s32 %v670, 224
    %v699 = vadd.s32 %v670, 232
    %v700 = vadd.s32 %v670, 240
    %v701 = vadd.s32 %v670, 248
    %v702 = vshra.s32 %v670, 4
    %v703 = vshra.s32 %v671, 4
    %v704 = vshra.s32 %v672, 4
    %v705 = vshra.s32 %v673, 4
    %v706 = vshra.s32 %v674, 4
    %v707 = vshra.s32 %v675, 4
    %v708 = vshra.s32 %v676, 4
    %v709 = vshra.s32 %v677, 4
    %v710 = vshra.s32 %v678, 4
    %v711 = vshra.s32 %v679, 4
    %v712 = vshra.s32 %v680, 4
    %v713 = vshra.s32 %v681, 4
    %v714 = vshra.s32 %v682, 4
    %v715 = vshra.s32 %v683, 4
    %v716 = vshra.s32 %v684, 4
    %v717 = vshra.s32 %v685, 4
    %v718 = vshra.s32 %v686, 4
    %v719 = vshra.s32 %v687, 4
    %v720 = vshra.s32 %v688, 4
    %v721 = vshra.s32 %v689, 4
    %v722 = vshra.s32 %v690, 4
    %v723 = vshra.s32 %v691, 4
    %v724 = vshra.s32 %v692, 4
    %v725 = vshra.s32 %v693, 4
    %v726 = vshra.s32 %v694, 4
    %v727 = vshra.s32 %v695, 4
    %v728 = vshra.s32 %v696, 4
    %v729 = vshra.s32 %v697, 4
    %v730 = vshra.s32 %v698, 4
    %v731 = vshra.s32 %v699, 4
    %v732 = vshra.s32 %v700, 4
    %v733 = vshra.s32 %v701, 4
    %v734 = vand.u32 %v670, 15
    %v735 = vand.u32 %v671, 15
    %v736 = vand.u32 %v672, 15
    %v737 = vand.u32 %v673, 15
    %v738 = vand.u32 %v674, 15
    %v739 = vand.u32 %v675, 15
    %v740 = vand.u32 %v676, 15
    %v741 = vand.u32 %v677, 15
    %v742 = vand.u32 %v678, 15
    %v743 = vand.u32 %v679, 15
    %v744 = vand.u32 %v680, 15
    %v745 = vand.u32 %v681, 15
    %v746 = vand.u32 %v682, 15
    %v747 = vand.u32 %v683, 15
    %v748 = vand.u32 %v684, 15
    %v749 = vand.u32 %v685, 15
    %v750 = vand.u32 %v686, 15
    %v751 = vand.u32 %v687, 15
    %v752 = vand.u32 %v688, 15
    %v753 = vand.u32 %v689, 15
    %v754 = vand.u32 %v690, 15
    %v755 = vand.u32 %v691, 15
    %v756 = vand.u32 %v692, 15
    %v757 = vand.u32 %v693, 15
    %v758 = vand.u32 %v694, 15
    %v759 = vand.u32 %v695, 15
    %v760 = vand.u32 %v696, 15
    %v761 = vand.u32 %v697, 15
    %v762 = vand.u32 %v698, 15
    %v763 = vand.u32 %v699, 15
    %v764 = vand.u32 %v700, 15
    %v765 = vand.u32 %v701, 15
    %v766 = vcvt.s32.f32 %v702
    %v767 = vcvt.s32.f32 %v703
    %v768 = vcvt.s32.f32 %v704
    %v769 = vcvt.s32.f32 %v705
    %v770 = vcvt.s32.f32 %v706
    %v771 = vcvt.s32.f32 %v707
    %v772 = vcvt.s32.f32 %v708
    %v773 = vcvt.s32.f32 %v709
    %v774 = vcvt.s32.f32 %v710
    %v775 = vcvt.s32.f32 %v711
    %v776 = vcvt.s32.f32 %v712
    %v777 = vcvt.s32.f32 %v713
    %v778 = vcvt.s32.f32 %v714
    %v779 = vcvt.s32.f32 %v715
    %v780 = vcvt.s32.f32 %v716
    %v781 = vcvt.s32.f32 %v717
    %v782 = vcvt.s32.f32 %v718
    %v783 = vcvt.s32.f32 %v719
    %v784 = vcvt.s32.f32 %v720
    %v785 = vcvt.s32.f32 %v721
    %v786 = vcvt.s32.f32 %v722
    %v787 = vcvt.s32.f32 %v723
    %v788 = vcvt.s32.f32 %v724
    %v789 = vcvt.s32.f32 %v725
    %v790 = vcvt.s32.f32 %v726
    %v791 = vcvt.s32.f32 %v727
    %v792 = vcvt.s32.f32 %v728
    %v793 = vcvt.s32.f32 %v729
    %v794 = vcvt.s32.f32 %v730
    %v795 = vcvt.s32.f32 %v731
    %v796 = vcvt.s32.f32 %v732
    %v797 = vcvt.s32.f32 %v733
    %v798 = vcvt.s32.f32 %v734
    %v799 = vcvt.s32.f32 %v735
    %v800 = vcvt.s32.f32 %v736
    %v801 = vcvt.s32.f32 %v737
    %v802 = vcvt.s32.f32 %v738
    %v803 = vcvt.s32.f32 %v739
    %v804 = vcvt.s32.f32 %v740
    %v805 = vcvt.s32.f32 %v741
    %v806 = vcvt.s32.f32 %v742
    %v807 = vcvt.s32.f32 %v743
    %v808 = vcvt.s32.f32 %v744
    %v809 = vcvt.s32.f32 %v745
    %v810 = vcvt.s32.f32 %v746
    %v811 = vcvt.s32.f32 %v747
    %v812 = vcvt.s32.f32 %v748
    %v813 = vcvt.s32.f32 %v749
    %v814 = vcvt.s32.f32 %v750
    %v815 = vcvt.s32.f32 %v751
    %v816 = vcvt.s32.f32 %v752
    %v817 = vcvt.s32.f32 %v753
    %v818 = vcvt.s32.f32 %v754
    %v819 = vcvt.s32.f32 %v755
    %v820 = vcvt.s32.f32 %v756
    %v821 = vcvt.s32.f32 %v757
    %v822 = vcvt.s32.f32 %v758
    %v823 = vcvt.s32.f32 %v759
    %v824 = vcvt.s32.f32 %v760
    %v825 = vcvt.s32.f32 %v761
    %v826 = vcvt.s32.f32 %v762
    %v827 = vcvt.s32.f32 %v763
    %v828 = vcvt.s32.f32 %v764
    %v829 = vcvt.s32.f32 %v765
    %v830 = vlaneseq
    %v831 = vshrl.u32 %v830, 7
    %v832 = vsub.s32 0, %v831
    %v833 = vrot.slane %v594, %v832
    %v834 = vsub.f32 %v798, %v833
    %v835 = vsub.f32 %v799, %v833
    %v836 = vsub.f32 %v800, %v833
    %v837 = vsub.f32 %v801, %v833
    %v838 = vsub.f32 %v802, %v833
    %v839 = vsub.f32 %v803, %v833
    %v840 = vsub.f32 %v804, %v833
    %v841 = vsub.f32 %v805, %v833
    %v842 = vsub.f32 %v806, %v833
    %v843 = vsub.f32 %v807, %v833
    %v844 = vsub.f32 %v808, %v833
    %v845 = vsub.f32 %v809, %v833
    %v846 = vsub.f32 %v810, %v833
    %v847 = vsub.f32 %v811, %v833
    %v848 = vsub.f32 %v812, %v833
    %v849 = vsub.f32 %v813, %v833
    %v850 = vsub.f32 %v814, %v833
    %v851 = vsub.f32 %v815, %v833
    %v852 = vsub.f32 %v816, %v833
    %v853 = vsub.f32 %v817, %v833
    %v854 = vsub.f32 %v818, %v833
    %v855 = vsub.f32 %v819, %v833
    %v856 = vsub.f32 %v820, %v833
    %v857 = vsub.f32 %v821, %v833
    %v858 = vsub.f32 %v822, %v833
    %v859 = vsub.f32 %v823, %v833
    %v860 = vsub.f32 %v824, %v833
    %v861 = vsub.f32 %v825, %v833
    %v862 = vsub.f32 %v826, %v833
    %v863 = vsub.f32 %v827, %v833
    %v864 = vsub.f32 %v828, %v833
    %v865 = vsub.f32 %v829, %v833
    %v866 = vand.u32 2147483647, %v834
    %v867 = vand.u32 2147483647, %v835
    %v868 = vand.u32 2147483647, %v836
    %v869 = vand.u32 2147483647, %v837
    %v870 = vand.u32 2147483647, %v838
    %v871 = vand.u32 2147483647, %v839
    %v872 = vand.u32 2147483647, %v840
    %v873 = vand.u32 2147483647, %v841
    %v874 = vand.u32 2147483647, %v842
    %v875 = vand.u32 2147483647, %v843
    %v876 = vand.u32 2147483647, %v844
    %v877 = vand.u32 2147483647, %v845
    %v878 = vand.u32 2147483647, %v846
    %v879 = vand.u32 2147483647, %v847
    %v880 = vand.u32 2147483647, %v848
    %v881 = vand.u32 2147483647, %v849
    %v882 = vand.u32 2147483647, %v850
    %v883 = vand.u32 2147483647, %v851
    %v884 = vand.u32 2147483647, %v852
    %v885 = vand.u32 2147483647, %v853
    %v886 = vand.u32 2147483647, %v854
    %v887 = vand.u32 2147483647, %v855
    %v888 = vand.u32 2147483647, %v856
    %v889 = vand.u32 2147483647, %v857
    %v890 = vand.u32 2147483647, %v858
    %v891 = vand.u32 2147483647, %v859
    %v892 = vand.u32 2147483647, %v860
    %v893 = vand.u32 2147483647, %v861
    %v894 = vand.u32 2147483647, %v862
    %v895 = vand.u32 2147483647, %v863
    %v896 = vand.u32 2147483647, %v864
    %v897 = vand.u32 2147483647, %v865
    %v898 = vsub.f32 1.0, %v866
    %v899 = vsub.f32 1.0, %v867
    %v900 = vsub.f32 1.0, %v868
    %v901 = vsub.f32 1.0, %v869
    %v902 = vsub.f32 1.0, %v870
    %v903 = vsub.f32 1.0, %v871
    %v904 = vsub.f32 1.0, %v872
    %v905 = vsub.f32 1.0, %v873
    %v906 = vsub.f32 1.0, %v874
    %v907 = vsub.f32 1.0, %v875
    %v908 = vsub.f32 1.0, %v876
    %v909 = vsub.f32 1.0, %v877
    %v910 = vsub.f32 1.0, %v878
    %v911 = vsub.f32 1.0, %v879
    %v912 = vsub.f32 1.0, %v880
    %v913 = vsub.f32 1.0, %v881
    %v914 = vsub.f32 1.0, %v882
    %v915 = vsub.f32 1.0, %v883
    %v916 = vsub.f32 1.0, %v884
    %v917 = vsub.f32 1.0, %v885
    %v918 = vsub.f32 1.0, %v886
    %v919 = vsub.f32 1.0, %v887
    %v920 = vsub.f32 1.0, %v888
    %v921 = vsub.f32 1.0, %v889
    %v922 = vsub.f32 1.0, %v890
    %v923 = vsub.f32 1.0, %v891
    %v924 = vsub.f32 1.0, %v892
    %v925 = vsub.f32 1.0, %v893
    %v926 = vsub.f32 1.0, %v894
    %v927 = vsub.f32 1.0, %v895
    %v928 = vsub.f32 1.0, %v896
    %v929 = vsub.f32 1.0, %v897
    %v930 = vmax.f32 %v898, 0.0
    %v931 = vmax.f32 %v899, 0.0
    %v932 = vmax.f32 %v900, 0.0
    %v933 = vmax.f32 %v901, 0.0
    %v934 = vmax.f32 %v902, 0.0
    %v935 = vmax.f32 %v903, 0.0
    %v936 = vmax.f32 %v904, 0.0
    %v937 = vmax.f32 %v905, 0.0
    %v938 = vmax.f32 %v906, 0.0
    %v939 = vmax.f32 %v907, 0.0
    %v940 = vmax.f32 %v908, 0.0
    %v941 = vmax.f32 %v909, 0.0
    %v942 = vmax.f32 %v910, 0.0
    %v943 = vmax.f32 %v911, 0.0
    %v944 = vmax.f32 %v912, 0.0
    %v945 = vmax.f32 %v913, 0.0
    %v946 = vmax.f32 %v914, 0.0
    %v947 = vmax.f32 %v915, 0.0
    %v948 = vmax.f32 %v916, 0.0
    %v949 = vmax.f32 %v917, 0.0
    %v950 = vmax.f32 %v918, 0.0
    %v951 = vmax.f32 %v919, 0.0
    %v952 = vmax.f32 %v920, 0.0
    %v953 = vmax.f32 %v921, 0.0
    %v954 = vmax.f32 %v922, 0.0
    %v955 = vmax.f32 %v923, 0.0
    %v956 = vmax.f32 %v924, 0.0
    %v957 = vmax.f32 %v925, 0.0
    %v958 = vmax.f32 %v926, 0.0
    %v959 = vmax.f32 %v927, 0.0
    %v960 = vmax.f32 %v928, 0.0
    %v961 = vmax.f32 %v929, 0.0
    %v962 = vlaneseq
    %v963 = vshrl.u32 %v962, 7
    %v964 = vsub.s32 0, %v963
    %v965 = vrot.slane %v665, %v964
    %v966 = vsub.f32 %v766, %v965
    %v967 = vsub.f32 %v767, %v965
    %v968 = vsub.f32 %v768, %v965
    %v969 = vsub.f32 %v769, %v965
    %v970 = vsub.f32 %v770, %v965
    %v971 = vsub.f32 %v771, %v965
    %v972 = vsub.f32 %v772, %v965
    %v973 = vsub.f32 %v773, %v965
    %v974 = vsub.f32 %v774, %v965
    %v975 = vsub.f32 %v775, %v965
    %v976 = vsub.f32 %v776, %v965
    %v977 = vsub.f32 %v777, %v965
    %v978 = vsub.f32 %v778, %v965
    %v979 = vsub.f32 %v779, %v965
    %v980 = vsub.f32 %v780, %v965
    %v981 = vsub.f32 %v781, %v965
    %v982 = vsub.f32 %v782, %v965
    %v983 = vsub.f32 %v783, %v965
    %v984 = vsub.f32 %v784, %v965
    %v985 = vsub.f32 %v785, %v965
    %v986 = vsub.f32 %v786, %v965
    %v987 = vsub.f32 %v787, %v965
    %v988 = vsub.f32 %v788, %v965
    %v989 = vsub.f32 %v789, %v965
    %v990 = vsub.f32 %v790, %v965
    %v991 = vsub.f32 %v791, %v965
    %v992 = vsub.f32 %v792, %v965
    %v993 = vsub.f32 %v793, %v965
    %v994 = vsub.f32 %v794, %v965
    %v995 = vsub.f32 %v795, %v965
    %v996 = vsub.f32 %v796, %v965
    %v997 = vsub.f32 %v797, %v965
    %v998 = vand.u32 2147483647, %v966
    %v999 = vand.u32 2147483647, %v967
    %v1000 = vand.u32 2147483647, %v968
    %v1001 = vand.u32 2147483647, %v969
    %v1002 = vand.u32 2147483647, %v970
    %v1003 = vand.u32 2147483647, %v971
    %v1004 = vand.u32 2147483647, %v972
    %v1005 = vand.u32 2147483647, %v973
    %v1006 = vand.u32 2147483647, %v974
    %v1007 = vand.u32 2147483647, %v975
    %v1008 = vand.u32 2147483647, %v976
    %v1009 = vand.u32 2147483647, %v977
    %v1010 = vand.u32 2147483647, %v978
    %v1011 = vand.u32 2147483647, %v979
    %v1012 = vand.u32 2147483647, %v980
    %v1013 = vand.u32 2147483647, %v981
    %v1014 = vand.u32 2147483647, %v982
    %v1015 = vand.u32 2147483647, %v983
    %v1016 = vand.u32 2147483647, %v984
    %v1017 = vand.u32 2147483647, %v985
    %v1018 = vand.u32 2147483647, %v986
    %v1019 = vand.u32 2147483647, %v987
    %v1020 = vand.u32 2147483647, %v988
    %v1021 = vand.u32 2147483647, %v989
    %v1022 = vand.u32 2147483647, %v990
    %v1023 = vand.u32 2147483647, %v991
    %v1024 = vand.u32 2147483647, %v992
    %v1025 = vand.u32 2147483647, %v993
    %v1026 = vand.u32 2147483647, %v994
    %v1027 = vand.u32 2147483647, %v995
    %v1028 = vand.u32 2147483647, %v996
    %v1029 = vand.u32 2147483647, %v997
    %v1030 = vsub.f32 1.0, %v998
    %v1031 = vsub.f32 1.0, %v999
    %v1032 = vsub.f32 1.0, %v1000
    %v1033 = vsub.f32 1.0, %v1001
    %v1034 = vsub.f32 1.0, %v1002
    %v1035 = vsub.f32 1.0, %v1003
    %v1036 = vsub.f32 1.0, %v1004
    %v1037 = vsub.f32 1.0, %v1005
    %v1038 = vsub.f32 1.0, %v1006
    %v1039 = vsub.f32 1.0, %v1007
    %v1040 = vsub.f32 1.0, %v1008
    %v1041 = vsub.f32 1.0, %v1009
    %v1042 = vsub.f32 1.0, %v1010
    %v1043 = vsub.f32 1.0, %v1011
    %v1044 = vsub.f32 1.0, %v1012
    %v1045 = vsub.f32 1.0, %v1013
    %v1046 = vsub.f32 1.0, %v1014
    %v1047 = vsub.f32 1.0, %v1015
    %v1048 = vsub.f32 1.0, %v1016
    %v1049 = vsub.f32 1.0, %v1017
    %v1050 = vsub.f32 1.0, %v1018
    %v1051 = vsub.f32 1.0, %v1019
    %v1052 = vsub.f32 1.0, %v1020
    %v1053 = vsub.f32 1.0, %v1021
    %v1054 = vsub.f32 1.0, %v1022
    %v1055 = vsub.f32 1.0, %v1023
    %v1056 = vsub.f32 1.0, %v1024
    %v1057 = vsub.f32 1.0, %v1025
    %v1058 = vsub.f32 1.0, %v1026
    %v1059 = vsub.f32 1.0, %v1027
    %v1060 = vsub.f32 1.0, %v1028
    %v1061 = vsub.f32 1.0, %v1029
    %v1062 = vmax.f32 %v1030, 0.0
    %v1063 = vmax.f32 %v1031, 0.0
    %v1064 = vmax.f32 %v1032, 0.0
    %v1065 = vmax.f32 %v1033, 0.0
    %v1066 = vmax.f32 %v1034, 0.0
    %v1067 = vmax.f32 %v1035, 0.0
    %v1068 = vmax.f32 %v1036, 0.0
    %v1069 = vmax.f32 %v1037, 0.0
    %v1070 = vmax.f32 %v1038, 0.0
    %v1071 = vmax.f32 %v1039, 0.0
    %v1072 = vmax.f32 %v1040, 0.0
    %v1073 = vmax.f32 %v1041, 0.0
    %v1074 = vmax.f32 %v1042, 0.0
    %v1075 = vmax.f32 %v1043, 0.0
    %v1076 = vmax.f32 %v1044, 0.0
    %v1077 = vmax.f32 %v1045, 0.0
    %v1078 = vmax.f32 %v1046, 0.0
    %v1079 = vmax.f32 %v1047, 0.0
    %v1080 = vmax.f32 %v1048, 0.0
    %v1081 = vmax.f32 %v1049, 0.0
    %v1082 = vmax.f32 %v1050, 0.0
    %v1083 = vmax.f32 %v1051, 0.0
    %v1084 = vmax.f32 %v1052, 0.0
    %v1085 = vmax.f32 %v1053, 0.0
    %v1086 = vmax.f32 %v1054, 0.0
    %v1087 = vmax.f32 %v1055, 0.0
    %v1088 = vmax.f32 %v1056, 0.0
    %v1089 = vmax.f32 %v1057, 0.0
    %v1090 = vmax.f32 %v1058, 0.0
    %v1091 = vmax.f32 %v1059, 0.0
    %v1092 = vmax.f32 %v1060, 0.0
    %v1093 = vmax.f32 %v1061, 0.0
    %v1094 = vmul.f32 %v930, %v1062
    %v1095 = vmul.f32 %v931, %v1063
    %v1096 = vmul.f32 %v932, %v1064
    %v1097 = vmul.f32 %v933, %v1065
    %v1098 = vmul.f32 %v934, %v1066
    %v1099 = vmul.f32 %v935, %v1067
    %v1100 = vmul.f32 %v936, %v1068
    %v1101 = vmul.f32 %v937, %v1069
    %v1102 = vmul.f32 %v938, %v1070
    %v1103 = vmul.f32 %v939, %v1071
    %v1104 = vmul.f32 %v940, %v1072
    %v1105 = vmul.f32 %v941, %v1073
    %v1106 = vmul.f32 %v942, %v1074
    %v1107 = vmul.f32 %v943, %v1075
    %v1108 = vmul.f32 %v944, %v1076
    %v1109 = vmul.f32 %v945, %v1077
    %v1110 = vmul.f32 %v946, %v1078
    %v1111 = vmul.f32 %v947, %v1079
    %v1112 = vmul.f32 %v948, %v1080
    %v1113 = vmul.f32 %v949, %v1081
    %v1114 = vmul.f32 %v950, %v1082
    %v1115 = vmul.f32 %v951, %v1083
    %v1116 = vmul.f32 %v952, %v1084
    %v1117 = vmul.f32 %v953, %v1085
    %v1118 = vmul.f32 %v954, %v1086
    %v1119 = vmul.f32 %v955, %v1087
    %v1120 = vmul.f32 %v956, %v1088
    %v1121 = vmul.f32 %v957, %v1089
    %v1122 = vmul.f32 %v958, %v1090
    %v1123 = vmul.f32 %v959, %v1091
    %v1124 = vmul.f32 %v960, %v1092
    %v1125 = vmul.f32 %v961, %v1093
    %1126 = vmatprep.subr.mxu0 0.0
    %1127 = vmatpush1.msra.mxu0 %v1094
    %1128 = vmatprep.subr.mxu0 0.0
    %1129 = vmatpush1.msra.mxu0 %v1095
    %1130 = vmatprep.subr.mxu0 0.0
    %1131 = vmatpush1.msra.mxu0 %v1096
    %1132 = vmatprep.subr.mxu0 0.0
    %1133 = vmatpush1.msra.mxu0 %v1097
    %1134 = vmatprep.subr.mxu0 0.0
    %1135 = vmatpush1.msra.mxu0 %v1098
    %1136 = vmatprep.subr.mxu0 0.0
    %1137 = vmatpush1.msra.mxu0 %v1099
    %1138 = vmatprep.subr.mxu0 0.0
    %1139 = vmatpush1.msra.mxu0 %v1100
    %1140 = vmatprep.subr.mxu0 0.0
    %1141 = vmatpush1.msra.mxu0 %v1101
    %1142 = vmatprep.subr.mxu0 0.0
    %1143 = vmatpush1.msra.mxu0 %v1102
    %1144 = vmatprep.subr.mxu0 0.0
    %1145 = vmatpush1.msra.mxu0 %v1103
    %1146 = vmatprep.subr.mxu0 0.0
    %1147 = vmatpush1.msra.mxu0 %v1104
    %1148 = vmatprep.subr.mxu0 0.0
    %1149 = vmatpush1.msra.mxu0 %v1105
    %1150 = vmatprep.subr.mxu0 0.0
    %1151 = vmatpush1.msra.mxu0 %v1106
    %1152 = vmatprep.subr.mxu0 0.0
    %1153 = vmatpush1.msra.mxu0 %v1107
    %1154 = vmatprep.subr.mxu0 0.0
    %1155 = vmatpush1.msra.mxu0 %v1108
    %1156 = vmatprep.subr.mxu0 0.0
    %1157 = vmatpush1.msra.mxu0 %v1109
    %1158 = vmatprep.subr.mxu0 0.0
    %1159 = vmatpush1.msra.mxu0 %v1110
    %1160 = vmatprep.subr.mxu0 0.0
    %1161 = vmatpush1.msra.mxu0 %v1111
    %1162 = vmatprep.subr.mxu0 0.0
    %1163 = vmatpush1.msra.mxu0 %v1112
    %1164 = vmatprep.subr.mxu0 0.0
    %1165 = vmatpush1.msra.mxu0 %v1113
    %1166 = vmatprep.subr.mxu0 0.0
    %1167 = vmatpush1.msra.mxu0 %v1114
    %1168 = vmatprep.subr.mxu0 0.0
    %1169 = vmatpush1.msra.mxu0 %v1115
    %1170 = vmatprep.subr.mxu0 0.0
    %1171 = vmatpush1.msra.mxu0 %v1116
    %1172 = vmatprep.subr.mxu0 0.0
    %1173 = vmatpush1.msra.mxu0 %v1117
    %1174 = vmatprep.subr.mxu0 0.0
    %1175 = vmatpush1.msra.mxu0 %v1118
    %1176 = vmatprep.subr.mxu0 0.0
    %1177 = vmatpush1.msra.mxu0 %v1119
    %1178 = vmatprep.subr.mxu0 0.0
    %1179 = vmatpush1.msra.mxu0 %v1120
    %1180 = vmatprep.subr.mxu0 0.0
    %1181 = vmatpush1.msra.mxu0 %v1121
    %1182 = vmatprep.subr.mxu0 0.0
    %1183 = vmatpush1.msra.mxu0 %v1122
    %1184 = vmatprep.subr.mxu0 0.0
    %1185 = vmatpush1.msra.mxu0 %v1123
    %1186 = vmatprep.subr.mxu0 0.0
    %1187 = vmatpush1.msra.mxu0 %v1124
    %1188 = vmatprep.subr.mxu0 0.0
    %1189 = vmatpush1.msra.mxu0 %v1125
    %1190 = vmatprep.mubr.f32.mxu0 %v40
    %1191 = vmatmul.mubr.f32.gmra.mrb[0].mxu0 %v39
    %v1192 = vpop.f32.mrb[0].mxu0
    %v1193 = vadd.f32 0.0, %v1192
    %v1194 = vpop.f32.mrb[0].mxu0
    %1195 = vdwg.mxu0
    %1196 = vst [vmem:[#allocation2] sm:$0xf] %v1193
    %v1197 = vlaneseq
    %v1198 = vshrl.u32 %v1197, 7
    %v1199 = vsub.s32 0, %v1198
    %v1200 = vrot.slane %v596, %v1199
    %v1201 = vsub.f32 %v798, %v1200
    %v1202 = vsub.f32 %v799, %v1200
    %v1203 = vsub.f32 %v800, %v1200
    %v1204 = vsub.f32 %v801, %v1200
    %v1205 = vsub.f32 %v802, %v1200
    %v1206 = vsub.f32 %v803, %v1200
    %v1207 = vsub.f32 %v804, %v1200
    %v1208 = vsub.f32 %v805, %v1200
    %v1209 = vsub.f32 %v806, %v1200
    %v1210 = vsub.f32 %v807, %v1200
    %v1211 = vsub.f32 %v808, %v1200
    %v1212 = vsub.f32 %v809, %v1200
    %v1213 = vsub.f32 %v810, %v1200
    %v1214 = vsub.f32 %v811, %v1200
    %v1215 = vsub.f32 %v812, %v1200
    %v1216 = vsub.f32 %v813, %v1200
    %v1217 = vsub.f32 %v814, %v1200
    %v1218 = vsub.f32 %v815, %v1200
    %v1219 = vsub.f32 %v816, %v1200
    %v1220 = vsub.f32 %v817, %v1200
    %v1221 = vsub.f32 %v818, %v1200
    %v1222 = vsub.f32 %v819, %v1200
    %v1223 = vsub.f32 %v820, %v1200
    %v1224 = vsub.f32 %v821, %v1200
    %v1225 = vsub.f32 %v822, %v1200
    %v1226 = vsub.f32 %v823, %v1200
    %v1227 = vsub.f32 %v824, %v1200
    %v1228 = vsub.f32 %v825, %v1200
    %v1229 = vsub.f32 %v826, %v1200
    %v1230 = vsub.f32 %v827, %v1200
    %v1231 = vsub.f32 %v828, %v1200
    %v1232 = vsub.f32 %v829, %v1200
    %v1233 = vand.u32 2147483647, %v1201
    %v1234 = vand.u32 2147483647, %v1202
    %v1235 = vand.u32 2147483647, %v1203
    %v1236 = vand.u32 2147483647, %v1204
    %v1237 = vand.u32 2147483647, %v1205
    %v1238 = vand.u32 2147483647, %v1206
    %v1239 = vand.u32 2147483647, %v1207
    %v1240 = vand.u32 2147483647, %v1208
    %v1241 = vand.u32 2147483647, %v1209
    %v1242 = vand.u32 2147483647, %v1210
    %v1243 = vand.u32 2147483647, %v1211
    %v1244 = vand.u32 2147483647, %v1212
    %v1245 = vand.u32 2147483647, %v1213
    %v1246 = vand.u32 2147483647, %v1214
    %v1247 = vand.u32 2147483647, %v1215
    %v1248 = vand.u32 2147483647, %v1216
    %v1249 = vand.u32 2147483647, %v1217
    %v1250 = vand.u32 2147483647, %v1218
    %v1251 = vand.u32 2147483647, %v1219
    %v1252 = vand.u32 2147483647, %v1220
    %v1253 = vand.u32 2147483647, %v1221
    %v1254 = vand.u32 2147483647, %v1222
    %v1255 = vand.u32 2147483647, %v1223
    %v1256 = vand.u32 2147483647, %v1224
    %v1257 = vand.u32 2147483647, %v1225
    %v1258 = vand.u32 2147483647, %v1226
    %v1259 = vand.u32 2147483647, %v1227
    %v1260 = vand.u32 2147483647, %v1228
    %v1261 = vand.u32 2147483647, %v1229
    %v1262 = vand.u32 2147483647, %v1230
    %v1263 = vand.u32 2147483647, %v1231
    %v1264 = vand.u32 2147483647, %v1232
    %v1265 = vsub.f32 1.0, %v1233
    %v1266 = vsub.f32 1.0, %v1234
    %v1267 = vsub.f32 1.0, %v1235
    %v1268 = vsub.f32 1.0, %v1236
    %v1269 = vsub.f32 1.0, %v1237
    %v1270 = vsub.f32 1.0, %v1238
    %v1271 = vsub.f32 1.0, %v1239
    %v1272 = vsub.f32 1.0, %v1240
    %v1273 = vsub.f32 1.0, %v1241
    %v1274 = vsub.f32 1.0, %v1242
    %v1275 = vsub.f32 1.0, %v1243
    %v1276 = vsub.f32 1.0, %v1244
    %v1277 = vsub.f32 1.0, %v1245
    %v1278 = vsub.f32 1.0, %v1246
    %v1279 = vsub.f32 1.0, %v1247
    %v1280 = vsub.f32 1.0, %v1248
    %v1281 = vsub.f32 1.0, %v1249
    %v1282 = vsub.f32 1.0, %v1250
    %v1283 = vsub.f32 1.0, %v1251
    %v1284 = vsub.f32 1.0, %v1252
    %v1285 = vsub.f32 1.0, %v1253
    %v1286 = vsub.f32 1.0, %v1254
    %v1287 = vsub.f32 1.0, %v1255
    %v1288 = vsub.f32 1.0, %v1256
    %v1289 = vsub.f32 1.0, %v1257
    %v1290 = vsub.f32 1.0, %v1258
    %v1291 = vsub.f32 1.0, %v1259
    %v1292 = vsub.f32 1.0, %v1260
    %v1293 = vsub.f32 1.0, %v1261
    %v1294 = vsub.f32 1.0, %v1262
    %v1295 = vsub.f32 1.0, %v1263
    %v1296 = vsub.f32 1.0, %v1264
    %v1297 = vmax.f32 %v1265, 0.0
    %v1298 = vmax.f32 %v1266, 0.0
    %v1299 = vmax.f32 %v1267, 0.0
    %v1300 = vmax.f32 %v1268, 0.0
    %v1301 = vmax.f32 %v1269, 0.0
    %v1302 = vmax.f32 %v1270, 0.0
    %v1303 = vmax.f32 %v1271, 0.0
    %v1304 = vmax.f32 %v1272, 0.0
    %v1305 = vmax.f32 %v1273, 0.0
    %v1306 = vmax.f32 %v1274, 0.0
    %v1307 = vmax.f32 %v1275, 0.0
    %v1308 = vmax.f32 %v1276, 0.0
    %v1309 = vmax.f32 %v1277, 0.0
    %v1310 = vmax.f32 %v1278, 0.0
    %v1311 = vmax.f32 %v1279, 0.0
    %v1312 = vmax.f32 %v1280, 0.0
    %v1313 = vmax.f32 %v1281, 0.0
    %v1314 = vmax.f32 %v1282, 0.0
    %v1315 = vmax.f32 %v1283, 0.0
    %v1316 = vmax.f32 %v1284, 0.0
    %v1317 = vmax.f32 %v1285, 0.0
    %v1318 = vmax.f32 %v1286, 0.0
    %v1319 = vmax.f32 %v1287, 0.0
    %v1320 = vmax.f32 %v1288, 0.0
    %v1321 = vmax.f32 %v1289, 0.0
    %v1322 = vmax.f32 %v1290, 0.0
    %v1323 = vmax.f32 %v1291, 0.0
    %v1324 = vmax.f32 %v1292, 0.0
    %v1325 = vmax.f32 %v1293, 0.0
    %v1326 = vmax.f32 %v1294, 0.0
    %v1327 = vmax.f32 %v1295, 0.0
    %v1328 = vmax.f32 %v1296, 0.0
    %v1329 = vlaneseq
    %v1330 = vshrl.u32 %v1329, 7
    %v1331 = vsub.s32 0, %v1330
    %v1332 = vrot.slane %v667, %v1331
    %v1333 = vsub.f32 %v766, %v1332
    %v1334 = vsub.f32 %v767, %v1332
    %v1335 = vsub.f32 %v768, %v1332
    %v1336 = vsub.f32 %v769, %v1332
    %v1337 = vsub.f32 %v770, %v1332
    %v1338 = vsub.f32 %v771, %v1332
    %v1339 = vsub.f32 %v772, %v1332
    %v1340 = vsub.f32 %v773, %v1332
    %v1341 = vsub.f32 %v774, %v1332
    %v1342 = vsub.f32 %v775, %v1332
    %v1343 = vsub.f32 %v776, %v1332
    %v1344 = vsub.f32 %v777, %v1332
    %v1345 = vsub.f32 %v778, %v1332
    %v1346 = vsub.f32 %v779, %v1332
    %v1347 = vsub.f32 %v780, %v1332
    %v1348 = vsub.f32 %v781, %v1332
    %v1349 = vsub.f32 %v782, %v1332
    %v1350 = vsub.f32 %v783, %v1332
    %v1351 = vsub.f32 %v784, %v1332
    %v1352 = vsub.f32 %v785, %v1332
    %v1353 = vsub.f32 %v786, %v1332
    %v1354 = vsub.f32 %v787, %v1332
    %v1355 = vsub.f32 %v788, %v1332
    %v1356 = vsub.f32 %v789, %v1332
    %v1357 = vsub.f32 %v790, %v1332
    %v1358 = vsub.f32 %v791, %v1332
    %v1359 = vsub.f32 %v792, %v1332
    %v1360 = vsub.f32 %v793, %v1332
    %v1361 = vsub.f32 %v794, %v1332
    %v1362 = vsub.f32 %v795, %v1332
    %v1363 = vsub.f32 %v796, %v1332
    %v1364 = vsub.f32 %v797, %v1332
    %v1365 = vand.u32 2147483647, %v1333
    %v1366 = vand.u32 2147483647, %v1334
    %v1367 = vand.u32 2147483647, %v1335
    %v1368 = vand.u32 2147483647, %v1336
    %v1369 = vand.u32 2147483647, %v1337
    %v1370 = vand.u32 2147483647, %v1338
    %v1371 = vand.u32 2147483647, %v1339
    %v1372 = vand.u32 2147483647, %v1340
    %v1373 = vand.u32 2147483647, %v1341
    %v1374 = vand.u32 2147483647, %v1342
    %v1375 = vand.u32 2147483647, %v1343
    %v1376 = vand.u32 2147483647, %v1344
    %v1377 = vand.u32 2147483647, %v1345
    %v1378 = vand.u32 2147483647, %v1346
    %v1379 = vand.u32 2147483647, %v1347
    %v1380 = vand.u32 2147483647, %v1348
    %v1381 = vand.u32 2147483647, %v1349
    %v1382 = vand.u32 2147483647, %v1350
    %v1383 = vand.u32 2147483647, %v1351
    %v1384 = vand.u32 2147483647, %v1352
    %v1385 = vand.u32 2147483647, %v1353
    %v1386 = vand.u32 2147483647, %v1354
    %v1387 = vand.u32 2147483647, %v1355
    %v1388 = vand.u32 2147483647, %v1356
    %v1389 = vand.u32 2147483647, %v1357
    %v1390 = vand.u32 2147483647, %v1358
    %v1391 = vand.u32 2147483647, %v1359
    %v1392 = vand.u32 2147483647, %v1360
    %v1393 = vand.u32 2147483647, %v1361
    %v1394 = vand.u32 2147483647, %v1362
    %v1395 = vand.u32 2147483647, %v1363
    %v1396 = vand.u32 2147483647, %v1364
    %v1397 = vsub.f32 1.0, %v1365
    %v1398 = vsub.f32 1.0, %v1366
    %v1399 = vsub.f32 1.0, %v1367
    %v1400 = vsub.f32 1.0, %v1368
    %v1401 = vsub.f32 1.0, %v1369
    %v1402 = vsub.f32 1.0, %v1370
    %v1403 = vsub.f32 1.0, %v1371
    %v1404 = vsub.f32 1.0, %v1372
    %v1405 = vsub.f32 1.0, %v1373
    %v1406 = vsub.f32 1.0, %v1374
    %v1407 = vsub.f32 1.0, %v1375
    %v1408 = vsub.f32 1.0, %v1376
    %v1409 = vsub.f32 1.0, %v1377
    %v1410 = vsub.f32 1.0, %v1378
    %v1411 = vsub.f32 1.0, %v1379
    %v1412 = vsub.f32 1.0, %v1380
    %v1413 = vsub.f32 1.0, %v1381
    %v1414 = vsub.f32 1.0, %v1382
    %v1415 = vsub.f32 1.0, %v1383
    %v1416 = vsub.f32 1.0, %v1384
    %v1417 = vsub.f32 1.0, %v1385
    %v1418 = vsub.f32 1.0, %v1386
    %v1419 = vsub.f32 1.0, %v1387
    %v1420 = vsub.f32 1.0, %v1388
    %v1421 = vsub.f32 1.0, %v1389
    %v1422 = vsub.f32 1.0, %v1390
    %v1423 = vsub.f32 1.0, %v1391
    %v1424 = vsub.f32 1.0, %v1392
    %v1425 = vsub.f32 1.0, %v1393
    %v1426 = vsub.f32 1.0, %v1394
    %v1427 = vsub.f32 1.0, %v1395
    %v1428 = vsub.f32 1.0, %v1396
    %v1429 = vmax.f32 %v1397, 0.0
    %v1430 = vmax.f32 %v1398, 0.0
    %v1431 = vmax.f32 %v1399, 0.0
    %v1432 = vmax.f32 %v1400, 0.0
    %v1433 = vmax.f32 %v1401, 0.0
    %v1434 = vmax.f32 %v1402, 0.0
    %v1435 = vmax.f32 %v1403, 0.0
    %v1436 = vmax.f32 %v1404, 0.0
    %v1437 = vmax.f32 %v1405, 0.0
    %v1438 = vmax.f32 %v1406, 0.0
    %v1439 = vmax.f32 %v1407, 0.0
    %v1440 = vmax.f32 %v1408, 0.0
    %v1441 = vmax.f32 %v1409, 0.0
    %v1442 = vmax.f32 %v1410, 0.0
    %v1443 = vmax.f32 %v1411, 0.0
    %v1444 = vmax.f32 %v1412, 0.0
    %v1445 = vmax.f32 %v1413, 0.0
    %v1446 = vmax.f32 %v1414, 0.0
    %v1447 = vmax.f32 %v1415, 0.0
    %v1448 = vmax.f32 %v1416, 0.0
    %v1449 = vmax.f32 %v1417, 0.0
    %v1450 = vmax.f32 %v1418, 0.0
    %v1451 = vmax.f32 %v1419, 0.0
    %v1452 = vmax.f32 %v1420, 0.0
    %v1453 = vmax.f32 %v1421, 0.0
    %v1454 = vmax.f32 %v1422, 0.0
    %v1455 = vmax.f32 %v1423, 0.0
    %v1456 = vmax.f32 %v1424, 0.0
    %v1457 = vmax.f32 %v1425, 0.0
    %v1458 = vmax.f32 %v1426, 0.0
    %v1459 = vmax.f32 %v1427, 0.0
    %v1460 = vmax.f32 %v1428, 0.0
    %v1461 = vmul.f32 %v1297, %v1429
    %v1462 = vmul.f32 %v1298, %v1430
    %v1463 = vmul.f32 %v1299, %v1431
    %v1464 = vmul.f32 %v1300, %v1432
    %v1465 = vmul.f32 %v1301, %v1433
    %v1466 = vmul.f32 %v1302, %v1434
    %v1467 = vmul.f32 %v1303, %v1435
    %v1468 = vmul.f32 %v1304, %v1436
    %v1469 = vmul.f32 %v1305, %v1437
    %v1470 = vmul.f32 %v1306, %v1438
    %v1471 = vmul.f32 %v1307, %v1439
    %v1472 = vmul.f32 %v1308, %v1440
    %v1473 = vmul.f32 %v1309, %v1441
    %v1474 = vmul.f32 %v1310, %v1442
    %v1475 = vmul.f32 %v1311, %v1443
    %v1476 = vmul.f32 %v1312, %v1444
    %v1477 = vmul.f32 %v1313, %v1445
    %v1478 = vmul.f32 %v1314, %v1446
    %v1479 = vmul.f32 %v1315, %v1447
    %v1480 = vmul.f32 %v1316, %v1448
    %v1481 = vmul.f32 %v1317, %v1449
    %v1482 = vmul.f32 %v1318, %v1450
    %v1483 = vmul.f32 %v1319, %v1451
    %v1484 = vmul.f32 %v1320, %v1452
    %v1485 = vmul.f32 %v1321, %v1453
    %v1486 = vmul.f32 %v1322, %v1454
    %v1487 = vmul.f32 %v1323, %v1455
    %v1488 = vmul.f32 %v1324, %v1456
    %v1489 = vmul.f32 %v1325, %v1457
    %v1490 = vmul.f32 %v1326, %v1458
    %v1491 = vmul.f32 %v1327, %v1459
    %v1492 = vmul.f32 %v1328, %v1460
    %1493 = vmatprep.subr.mxu0 0.0
    %1494 = vmatpush1.msra.mxu0 %v1461
    %1495 = vmatprep.subr.mxu0 0.0
    %1496 = vmatpush1.msra.mxu0 %v1462
    %1497 = vmatprep.subr.mxu0 0.0
    %1498 = vmatpush1.msra.mxu0 %v1463
    %1499 = vmatprep.subr.mxu0 0.0
    %1500 = vmatpush1.msra.mxu0 %v1464
    %1501 = vmatprep.subr.mxu0 0.0
    %1502 = vmatpush1.msra.mxu0 %v1465
    %1503 = vmatprep.subr.mxu0 0.0
    %1504 = vmatpush1.msra.mxu0 %v1466
    %1505 = vmatprep.subr.mxu0 0.0
    %1506 = vmatpush1.msra.mxu0 %v1467
    %1507 = vmatprep.subr.mxu0 0.0
    %1508 = vmatpush1.msra.mxu0 %v1468
    %1509 = vmatprep.subr.mxu0 0.0
    %1510 = vmatpush1.msra.mxu0 %v1469
    %1511 = vmatprep.subr.mxu0 0.0
    %1512 = vmatpush1.msra.mxu0 %v1470
    %1513 = vmatprep.subr.mxu0 0.0
    %1514 = vmatpush1.msra.mxu0 %v1471
    %1515 = vmatprep.subr.mxu0 0.0
    %1516 = vmatpush1.msra.mxu0 %v1472
    %1517 = vmatprep.subr.mxu0 0.0
    %1518 = vmatpush1.msra.mxu0 %v1473
    %1519 = vmatprep.subr.mxu0 0.0
    %1520 = vmatpush1.msra.mxu0 %v1474
    %1521 = vmatprep.subr.mxu0 0.0
    %1522 = vmatpush1.msra.mxu0 %v1475
    %1523 = vmatprep.subr.mxu0 0.0
    %1524 = vmatpush1.msra.mxu0 %v1476
    %1525 = vmatprep.subr.mxu0 0.0
    %1526 = vmatpush1.msra.mxu0 %v1477
    %1527 = vmatprep.subr.mxu0 0.0
    %1528 = vmatpush1.msra.mxu0 %v1478
    %1529 = vmatprep.subr.mxu0 0.0
    %1530 = vmatpush1.msra.mxu0 %v1479
    %1531 = vmatprep.subr.mxu0 0.0
    %1532 = vmatpush1.msra.mxu0 %v1480
    %1533 = vmatprep.subr.mxu0 0.0
    %1534 = vmatpush1.msra.mxu0 %v1481
    %1535 = vmatprep.subr.mxu0 0.0
    %1536 = vmatpush1.msra.mxu0 %v1482
    %1537 = vmatprep.subr.mxu0 0.0
    %1538 = vmatpush1.msra.mxu0 %v1483
    %1539 = vmatprep.subr.mxu0 0.0
    %1540 = vmatpush1.msra.mxu0 %v1484
    %1541 = vmatprep.subr.mxu0 0.0
    %1542 = vmatpush1.msra.mxu0 %v1485
    %1543 = vmatprep.subr.mxu0 0.0
    %1544 = vmatpush1.msra.mxu0 %v1486
    %1545 = vmatprep.subr.mxu0 0.0
    %1546 = vmatpush1.msra.mxu0 %v1487
    %1547 = vmatprep.subr.mxu0 0.0
    %1548 = vmatpush1.msra.mxu0 %v1488
    %1549 = vmatprep.subr.mxu0 0.0
    %1550 = vmatpush1.msra.mxu0 %v1489
    %1551 = vmatprep.subr.mxu0 0.0
    %1552 = vmatpush1.msra.mxu0 %v1490
    %1553 = vmatprep.subr.mxu0 0.0
    %1554 = vmatpush1.msra.mxu0 %v1491
    %1555 = vmatprep.subr.mxu0 0.0
    %1556 = vmatpush1.msra.mxu0 %v1492
    %1557 = vmatprep.mubr.f32.mxu0 %v40
    %1558 = vmatmul.mubr.f32.gmra.mrb[0].mxu0 %v39
    %v1559 = vpop.f32.mrb[0].mxu0
    %v1560 = vadd.f32 0.0, %v1559
    %v1561 = vpop.f32.mrb[0].mxu0
    %1562 = vdwg.mxu0
    %1563 = vst [vmem:[#allocation2 + $0x8] sm:$0xf] %v1560
    %v1564 = vlaneseq
    %v1565 = vshrl.u32 %v1564, 7
    %v1566 = vsub.s32 1, %v1565
    %v1567 = vrot.slane %v594, %v1566
    %v1568 = vsub.f32 %v798, %v1567
    %v1569 = vsub.f32 %v799, %v1567
    %v1570 = vsub.f32 %v800, %v1567
    %v1571 = vsub.f32 %v801, %v1567
    %v1572 = vsub.f32 %v802, %v1567
    %v1573 = vsub.f32 %v803, %v1567
    %v1574 = vsub.f32 %v804, %v1567
    %v1575 = vsub.f32 %v805, %v1567
    %v1576 = vsub.f32 %v806, %v1567
    %v1577 = vsub.f32 %v807, %v1567
    %v1578 = vsub.f32 %v808, %v1567
    %v1579 = vsub.f32 %v809, %v1567
    %v1580 = vsub.f32 %v810, %v1567
    %v1581 = vsub.f32 %v811, %v1567
    %v1582 = vsub.f32 %v812, %v1567
    %v1583 = vsub.f32 %v813, %v1567
    %v1584 = vsub.f32 %v814, %v1567
    %v1585 = vsub.f32 %v815, %v1567
    %v1586 = vsub.f32 %v816, %v1567
    %v1587 = vsub.f32 %v817, %v1567
    %v1588 = vsub.f32 %v818, %v1567
    %v1589 = vsub.f32 %v819, %v1567
    %v1590 = vsub.f32 %v820, %v1567
    %v1591 = vsub.f32 %v821, %v1567
    %v1592 = vsub.f32 %v822, %v1567
    %v1593 = vsub.f32 %v823, %v1567
    %v1594 = vsub.f32 %v824, %v1567
    %v1595 = vsub.f32 %v825, %v1567
    %v1596 = vsub.f32 %v826, %v1567
    %v1597 = vsub.f32 %v827, %v1567
    %v1598 = vsub.f32 %v828, %v1567
    %v1599 = vsub.f32 %v829, %v1567
    %v1600 = vand.u32 2147483647, %v1568
    %v1601 = vand.u32 2147483647, %v1569
    %v1602 = vand.u32 2147483647, %v1570
    %v1603 = vand.u32 2147483647, %v1571
    %v1604 = vand.u32 2147483647, %v1572
    %v1605 = vand.u32 2147483647, %v1573
    %v1606 = vand.u32 2147483647, %v1574
    %v1607 = vand.u32 2147483647, %v1575
    %v1608 = vand.u32 2147483647, %v1576
    %v1609 = vand.u32 2147483647, %v1577
    %v1610 = vand.u32 2147483647, %v1578
    %v1611 = vand.u32 2147483647, %v1579
    %v1612 = vand.u32 2147483647, %v1580
    %v1613 = vand.u32 2147483647, %v1581
    %v1614 = vand.u32 2147483647, %v1582
    %v1615 = vand.u32 2147483647, %v1583
    %v1616 = vand.u32 2147483647, %v1584
    %v1617 = vand.u32 2147483647, %v1585
    %v1618 = vand.u32 2147483647, %v1586
    %v1619 = vand.u32 2147483647, %v1587
    %v1620 = vand.u32 2147483647, %v1588
    %v1621 = vand.u32 2147483647, %v1589
    %v1622 = vand.u32 2147483647, %v1590
    %v1623 = vand.u32 2147483647, %v1591
    %v1624 = vand.u32 2147483647, %v1592
    %v1625 = vand.u32 2147483647, %v1593
    %v1626 = vand.u32 2147483647, %v1594
    %v1627 = vand.u32 2147483647, %v1595
    %v1628 = vand.u32 2147483647, %v1596
    %v1629 = vand.u32 2147483647, %v1597
    %v1630 = vand.u32 2147483647, %v1598
    %v1631 = vand.u32 2147483647, %v1599
    %v1632 = vsub.f32 1.0, %v1600
    %v1633 = vsub.f32 1.0, %v1601
    %v1634 = vsub.f32 1.0, %v1602
    %v1635 = vsub.f32 1.0, %v1603
    %v1636 = vsub.f32 1.0, %v1604
    %v1637 = vsub.f32 1.0, %v1605
    %v1638 = vsub.f32 1.0, %v1606
    %v1639 = vsub.f32 1.0, %v1607
    %v1640 = vsub.f32 1.0, %v1608
    %v1641 = vsub.f32 1.0, %v1609
    %v1642 = vsub.f32 1.0, %v1610
    %v1643 = vsub.f32 1.0, %v1611
    %v1644 = vsub.f32 1.0, %v1612
    %v1645 = vsub.f32 1.0, %v1613
    %v1646 = vsub.f32 1.0, %v1614
    %v1647 = vsub.f32 1.0, %v1615
    %v1648 = vsub.f32 1.0, %v1616
    %v1649 = vsub.f32 1.0, %v1617
    %v1650 = vsub.f32 1.0, %v1618
    %v1651 = vsub.f32 1.0, %v1619
    %v1652 = vsub.f32 1.0, %v1620
    %v1653 = vsub.f32 1.0, %v1621
    %v1654 = vsub.f32 1.0, %v1622
    %v1655 = vsub.f32 1.0, %v1623
    %v1656 = vsub.f32 1.0, %v1624
    %v1657 = vsub.f32 1.0, %v1625
    %v1658 = vsub.f32 1.0, %v1626
    %v1659 = vsub.f32 1.0, %v1627
    %v1660 = vsub.f32 1.0, %v1628
    %v1661 = vsub.f32 1.0, %v1629
    %v1662 = vsub.f32 1.0, %v1630
    %v1663 = vsub.f32 1.0, %v1631
    %v1664 = vmax.f32 %v1632, 0.0
    %v1665 = vmax.f32 %v1633, 0.0
    %v1666 = vmax.f32 %v1634, 0.0
    %v1667 = vmax.f32 %v1635, 0.0
    %v1668 = vmax.f32 %v1636, 0.0
    %v1669 = vmax.f32 %v1637, 0.0
    %v1670 = vmax.f32 %v1638, 0.0
    %v1671 = vmax.f32 %v1639, 0.0
    %v1672 = vmax.f32 %v1640, 0.0
    %v1673 = vmax.f32 %v1641, 0.0
    %v1674 = vmax.f32 %v1642, 0.0
    %v1675 = vmax.f32 %v1643, 0.0
    %v1676 = vmax.f32 %v1644, 0.0
    %v1677 = vmax.f32 %v1645, 0.0
    %v1678 = vmax.f32 %v1646, 0.0
    %v1679 = vmax.f32 %v1647, 0.0
    %v1680 = vmax.f32 %v1648, 0.0
    %v1681 = vmax.f32 %v1649, 0.0
    %v1682 = vmax.f32 %v1650, 0.0
    %v1683 = vmax.f32 %v1651, 0.0
    %v1684 = vmax.f32 %v1652, 0.0
    %v1685 = vmax.f32 %v1653, 0.0
    %v1686 = vmax.f32 %v1654, 0.0
    %v1687 = vmax.f32 %v1655, 0.0
    %v1688 = vmax.f32 %v1656, 0.0
    %v1689 = vmax.f32 %v1657, 0.0
    %v1690 = vmax.f32 %v1658, 0.0
    %v1691 = vmax.f32 %v1659, 0.0
    %v1692 = vmax.f32 %v1660, 0.0
    %v1693 = vmax.f32 %v1661, 0.0
    %v1694 = vmax.f32 %v1662, 0.0
    %v1695 = vmax.f32 %v1663, 0.0
    %v1696 = vlaneseq
    %v1697 = vshrl.u32 %v1696, 7
    %v1698 = vsub.s32 1, %v1697
    %v1699 = vrot.slane %v665, %v1698
    %v1700 = vsub.f32 %v766, %v1699
    %v1701 = vsub.f32 %v767, %v1699
    %v1702 = vsub.f32 %v768, %v1699
    %v1703 = vsub.f32 %v769, %v1699
    %v1704 = vsub.f32 %v770, %v1699
    %v1705 = vsub.f32 %v771, %v1699
    %v1706 = vsub.f32 %v772, %v1699
    %v1707 = vsub.f32 %v773, %v1699
    %v1708 = vsub.f32 %v774, %v1699
    %v1709 = vsub.f32 %v775, %v1699
    %v1710 = vsub.f32 %v776, %v1699
    %v1711 = vsub.f32 %v777, %v1699
    %v1712 = vsub.f32 %v778, %v1699
    %v1713 = vsub.f32 %v779, %v1699
    %v1714 = vsub.f32 %v780, %v1699
    %v1715 = vsub.f32 %v781, %v1699
    %v1716 = vsub.f32 %v782, %v1699
    %v1717 = vsub.f32 %v783, %v1699
    %v1718 = vsub.f32 %v784, %v1699
    %v1719 = vsub.f32 %v785, %v1699
    %v1720 = vsub.f32 %v786, %v1699
    %v1721 = vsub.f32 %v787, %v1699
    %v1722 = vsub.f32 %v788, %v1699
    %v1723 = vsub.f32 %v789, %v1699
    %v1724 = vsub.f32 %v790, %v1699
    %v1725 = vsub.f32 %v791, %v1699
    %v1726 = vsub.f32 %v792, %v1699
    %v1727 = vsub.f32 %v793, %v1699
    %v1728 = vsub.f32 %v794, %v1699
    %v1729 = vsub.f32 %v795, %v1699
    %v1730 = vsub.f32 %v796, %v1699
    %v1731 = vsub.f32 %v797, %v1699
    %v1732 = vand.u32 2147483647, %v1700
    %v1733 = vand.u32 2147483647, %v1701
    %v1734 = vand.u32 2147483647, %v1702
    %v1735 = vand.u32 2147483647, %v1703
    %v1736 = vand.u32 2147483647, %v1704
    %v1737 = vand.u32 2147483647, %v1705
    %v1738 = vand.u32 2147483647, %v1706
    %v1739 = vand.u32 2147483647, %v1707
    %v1740 = vand.u32 2147483647, %v1708
    %v1741 = vand.u32 2147483647, %v1709
    %v1742 = vand.u32 2147483647, %v1710
    %v1743 = vand.u32 2147483647, %v1711
    %v1744 = vand.u32 2147483647, %v1712
    %v1745 = vand.u32 2147483647, %v1713
    %v1746 = vand.u32 2147483647, %v1714
    %v1747 = vand.u32 2147483647, %v1715
    %v1748 = vand.u32 2147483647, %v1716
    %v1749 = vand.u32 2147483647, %v1717
    %v1750 = vand.u32 2147483647, %v1718
    %v1751 = vand.u32 2147483647, %v1719
    %v1752 = vand.u32 2147483647, %v1720
    %v1753 = vand.u32 2147483647, %v1721
    %v1754 = vand.u32 2147483647, %v1722
    %v1755 = vand.u32 2147483647, %v1723
    %v1756 = vand.u32 2147483647, %v1724
    %v1757 = vand.u32 2147483647, %v1725
    %v1758 = vand.u32 2147483647, %v1726
    %v1759 = vand.u32 2147483647, %v1727
    %v1760 = vand.u32 2147483647, %v1728
    %v1761 = vand.u32 2147483647, %v1729
    %v1762 = vand.u32 2147483647, %v1730
    %v1763 = vand.u32 2147483647, %v1731
    %v1764 = vsub.f32 1.0, %v1732
    %v1765 = vsub.f32 1.0, %v1733
    %v1766 = vsub.f32 1.0, %v1734
    %v1767 = vsub.f32 1.0, %v1735
    %v1768 = vsub.f32 1.0, %v1736
    %v1769 = vsub.f32 1.0, %v1737
    %v1770 = vsub.f32 1.0, %v1738
    %v1771 = vsub.f32 1.0, %v1739
    %v1772 = vsub.f32 1.0, %v1740
    %v1773 = vsub.f32 1.0, %v1741
    %v1774 = vsub.f32 1.0, %v1742
    %v1775 = vsub.f32 1.0, %v1743
    %v1776 = vsub.f32 1.0, %v1744
    %v1777 = vsub.f32 1.0, %v1745
    %v1778 = vsub.f32 1.0, %v1746
    %v1779 = vsub.f32 1.0, %v1747
    %v1780 = vsub.f32 1.0, %v1748
    %v1781 = vsub.f32 1.0, %v1749
    %v1782 = vsub.f32 1.0, %v1750
    %v1783 = vsub.f32 1.0, %v1751
    %v1784 = vsub.f32 1.0, %v1752
    %v1785 = vsub.f32 1.0, %v1753
    %v1786 = vsub.f32 1.0, %v1754
    %v1787 = vsub.f32 1.0, %v1755
    %v1788 = vsub.f32 1.0, %v1756
    %v1789 = vsub.f32 1.0, %v1757
    %v1790 = vsub.f32 1.0, %v1758
    %v1791 = vsub.f32 1.0, %v1759
    %v1792 = vsub.f32 1.0, %v1760
    %v1793 = vsub.f32 1.0, %v1761
    %v1794 = vsub.f32 1.0, %v1762
    %v1795 = vsub.f32 1.0, %v1763
    %v1796 = vmax.f32 %v1764, 0.0
    %v1797 = vmax.f32 %v1765, 0.0
    %v1798 = vmax.f32 %v1766, 0.0
    %v1799 = vmax.f32 %v1767, 0.0
    %v1800 = vmax.f32 %v1768, 0.0
    %v1801 = vmax.f32 %v1769, 0.0
    %v1802 = vmax.f32 %v1770, 0.0
    %v1803 = vmax.f32 %v1771, 0.0
    %v1804 = vmax.f32 %v1772, 0.0
    %v1805 = vmax.f32 %v1773, 0.0
    %v1806 = vmax.f32 %v1774, 0.0
    %v1807 = vmax.f32 %v1775, 0.0
    %v1808 = vmax.f32 %v1776, 0.0
    %v1809 = vmax.f32 %v1777, 0.0
    %v1810 = vmax.f32 %v1778, 0.0
    %v1811 = vmax.f32 %v1779, 0.0
    %v1812 = vmax.f32 %v1780, 0.0
    %v1813 = vmax.f32 %v1781, 0.0
    %v1814 = vmax.f32 %v1782, 0.0
    %v1815 = vmax.f32 %v1783, 0.0
    %v1816 = vmax.f32 %v1784, 0.0
    %v1817 = vmax.f32 %v1785, 0.0
    %v1818 = vmax.f32 %v1786, 0.0
    %v1819 = vmax.f32 %v1787, 0.0
    %v1820 = vmax.f32 %v1788, 0.0
    %v1821 = vmax.f32 %v1789, 0.0
    %v1822 = vmax.f32 %v1790, 0.0
    %v1823 = vmax.f32 %v1791, 0.0
    %v1824 = vmax.f32 %v1792, 0.0
    %v1825 = vmax.f32 %v1793, 0.0
    %v1826 = vmax.f32 %v1794, 0.0
    %v1827 = vmax.f32 %v1795, 0.0
    %v1828 = vmul.f32 %v1664, %v1796
    %v1829 = vmul.f32 %v1665, %v1797
    %v1830 = vmul.f32 %v1666, %v1798
    %v1831 = vmul.f32 %v1667, %v1799
    %v1832 = vmul.f32 %v1668, %v1800
    %v1833 = vmul.f32 %v1669, %v1801
    %v1834 = vmul.f32 %v1670, %v1802
    %v1835 = vmul.f32 %v1671, %v1803
    %v1836 = vmul.f32 %v1672, %v1804
    %v1837 = vmul.f32 %v1673, %v1805
    %v1838 = vmul.f32 %v1674, %v1806
    %v1839 = vmul.f32 %v1675, %v1807
    %v1840 = vmul.f32 %v1676, %v1808
    %v1841 = vmul.f32 %v1677, %v1809
    %v1842 = vmul.f32 %v1678, %v1810
    %v1843 = vmul.f32 %v1679, %v1811
    %v1844 = vmul.f32 %v1680, %v1812
    %v1845 = vmul.f32 %v1681, %v1813
    %v1846 = vmul.f32 %v1682, %v1814
    %v1847 = vmul.f32 %v1683, %v1815
    %v1848 = vmul.f32 %v1684, %v1816
    %v1849 = vmul.f32 %v1685, %v1817
    %v1850 = vmul.f32 %v1686, %v1818
    %v1851 = vmul.f32 %v1687, %v1819
    %v1852 = vmul.f32 %v1688, %v1820
    %v1853 = vmul.f32 %v1689, %v1821
    %v1854 = vmul.f32 %v1690, %v1822
    %v1855 = vmul.f32 %v1691, %v1823
    %v1856 = vmul.f32 %v1692, %v1824
    %v1857 = vmul.f32 %v1693, %v1825
    %v1858 = vmul.f32 %v1694, %v1826
    %v1859 = vmul.f32 %v1695, %v1827
    %v1862 = vrot.slane %v39, 4
    %v1863 = vrot.slane %v40, 4
    %1866 = vmatprep.subr.mxu0 0.0
    %1867 = vmatpush1.msra.mxu0 %v1828
    %1868 = vmatprep.subr.mxu0 0.0
    %1869 = vmatpush1.msra.mxu0 %v1829
    %1870 = vmatprep.subr.mxu0 0.0
    %1871 = vmatpush1.msra.mxu0 %v1830
    %1872 = vmatprep.subr.mxu0 0.0
    %1873 = vmatpush1.msra.mxu0 %v1831
    %1874 = vmatprep.subr.mxu0 0.0
    %1875 = vmatpush1.msra.mxu0 %v1832
    %1876 = vmatprep.subr.mxu0 0.0
    %1877 = vmatpush1.msra.mxu0 %v1833
    %1878 = vmatprep.subr.mxu0 0.0
    %1879 = vmatpush1.msra.mxu0 %v1834
    %1880 = vmatprep.subr.mxu0 0.0
    %1881 = vmatpush1.msra.mxu0 %v1835
    %1882 = vmatprep.subr.mxu0 0.0
    %1883 = vmatpush1.msra.mxu0 %v1836
    %1884 = vmatprep.subr.mxu0 0.0
    %1885 = vmatpush1.msra.mxu0 %v1837
    %1886 = vmatprep.subr.mxu0 0.0
    %1887 = vmatpush1.msra.mxu0 %v1838
    %1888 = vmatprep.subr.mxu0 0.0
    %1889 = vmatpush1.msra.mxu0 %v1839
    %1890 = vmatprep.subr.mxu0 0.0
    %1891 = vmatpush1.msra.mxu0 %v1840
    %1892 = vmatprep.subr.mxu0 0.0
    %1893 = vmatpush1.msra.mxu0 %v1841
    %1894 = vmatprep.subr.mxu0 0.0
    %1895 = vmatpush1.msra.mxu0 %v1842
    %1896 = vmatprep.subr.mxu0 0.0
    %1897 = vmatpush1.msra.mxu0 %v1843
    %1898 = vmatprep.subr.mxu0 0.0
    %1899 = vmatpush1.msra.mxu0 %v1844
    %1900 = vmatprep.subr.mxu0 0.0
    %1901 = vmatpush1.msra.mxu0 %v1845
    %1902 = vmatprep.subr.mxu0 0.0
    %1903 = vmatpush1.msra.mxu0 %v1846
    %1904 = vmatprep.subr.mxu0 0.0
    %1905 = vmatpush1.msra.mxu0 %v1847
    %1906 = vmatprep.subr.mxu0 0.0
    %1907 = vmatpush1.msra.mxu0 %v1848
    %1908 = vmatprep.subr.mxu0 0.0
    %1909 = vmatpush1.msra.mxu0 %v1849
    %1910 = vmatprep.subr.mxu0 0.0
    %1911 = vmatpush1.msra.mxu0 %v1850
    %1912 = vmatprep.subr.mxu0 0.0
    %1913 = vmatpush1.msra.mxu0 %v1851
    %1914 = vmatprep.subr.mxu0 0.0
    %1915 = vmatpush1.msra.mxu0 %v1852
    %1916 = vmatprep.subr.mxu0 0.0
    %1917 = vmatpush1.msra.mxu0 %v1853
    %1918 = vmatprep.subr.mxu0 0.0
    %1919 = vmatpush1.msra.mxu0 %v1854
    %1920 = vmatprep.subr.mxu0 0.0
    %1921 = vmatpush1.msra.mxu0 %v1855
    %1922 = vmatprep.subr.mxu0 0.0
    %1923 = vmatpush1.msra.mxu0 %v1856
    %1924 = vmatprep.subr.mxu0 0.0
    %1925 = vmatpush1.msra.mxu0 %v1857
    %1926 = vmatprep.subr.mxu0 0.0
    %1927 = vmatpush1.msra.mxu0 %v1858
    %1928 = vmatprep.subr.mxu0 0.0
    %1929 = vmatpush1.msra.mxu0 %v1859
    %1930 = vmatprep.mubr.f32.mxu0 %v1863
    %1931 = vmatmul.mubr.f32.gmra.mrb[0].mxu0 %v1862
    %v1932 = vpop.f32.mrb[0].mxu0
    %v1933 = vadd.f32 0.0, %v1932
    %v1934 = vpop.f32.mrb[0].mxu0
    %1935 = vdwg.mxu0
    %v1937 = vrot.slane %v1933, 4
    %1939 = vst [vmem:[#allocation2] sm:$0xf0] %v1937
    %v1940 = vlaneseq
    %v1941 = vshrl.u32 %v1940, 7
    %v1942 = vsub.s32 1, %v1941
    %v1943 = vrot.slane %v596, %v1942
    %v1944 = vsub.f32 %v798, %v1943
    %v1945 = vsub.f32 %v799, %v1943
    %v1946 = vsub.f32 %v800, %v1943
    %v1947 = vsub.f32 %v801, %v1943
    %v1948 = vsub.f32 %v802, %v1943
    %v1949 = vsub.f32 %v803, %v1943
    %v1950 = vsub.f32 %v804, %v1943
    %v1951 = vsub.f32 %v805, %v1943
    %v1952 = vsub.f32 %v806, %v1943
    %v1953 = vsub.f32 %v807, %v1943
    %v1954 = vsub.f32 %v808, %v1943
    %v1955 = vsub.f32 %v809, %v1943
    %v1956 = vsub.f32 %v810, %v1943
    %v1957 = vsub.f32 %v811, %v1943
    %v1958 = vsub.f32 %v812, %v1943
    %v1959 = vsub.f32 %v813, %v1943
    %v1960 = vsub.f32 %v814, %v1943
    %v1961 = vsub.f32 %v815, %v1943
    %v1962 = vsub.f32 %v816, %v1943
    %v1963 = vsub.f32 %v817, %v1943
    %v1964 = vsub.f32 %v818, %v1943
    %v1965 = vsub.f32 %v819, %v1943
    %v1966 = vsub.f32 %v820, %v1943
    %v1967 = vsub.f32 %v821, %v1943
    %v1968 = vsub.f32 %v822, %v1943
    %v1969 = vsub.f32 %v823, %v1943
    %v1970 = vsub.f32 %v824, %v1943
    %v1971 = vsub.f32 %v825, %v1943
    %v1972 = vsub.f32 %v826, %v1943
    %v1973 = vsub.f32 %v827, %v1943
    %v1974 = vsub.f32 %v828, %v1943
    %v1975 = vsub.f32 %v829, %v1943
    %v1976 = vand.u32 2147483647, %v1944
    %v1977 = vand.u32 2147483647, %v1945
    %v1978 = vand.u32 2147483647, %v1946
    %v1979 = vand.u32 2147483647, %v1947
    %v1980 = vand.u32 2147483647, %v1948
    %v1981 = vand.u32 2147483647, %v1949
    %v1982 = vand.u32 2147483647, %v1950
    %v1983 = vand.u32 2147483647, %v1951
    %v1984 = vand.u32 2147483647, %v1952
    %v1985 = vand.u32 2147483647, %v1953
    %v1986 = vand.u32 2147483647, %v1954
    %v1987 = vand.u32 2147483647, %v1955
    %v1988 = vand.u32 2147483647, %v1956
    %v1989 = vand.u32 2147483647, %v1957
    %v1990 = vand.u32 2147483647, %v1958
    %v1991 = vand.u32 2147483647, %v1959
    %v1992 = vand.u32 2147483647, %v1960
    %v1993 = vand.u32 2147483647, %v1961
    %v1994 = vand.u32 2147483647, %v1962
    %v1995 = vand.u32 2147483647, %v1963
    %v1996 = vand.u32 2147483647, %v1964
    %v1997 = vand.u32 2147483647, %v1965
    %v1998 = vand.u32 2147483647, %v1966
    %v1999 = vand.u32 2147483647, %v1967
    %v2000 = vand.u32 2147483647, %v1968
    %v2001 = vand.u32 2147483647, %v1969
    %v2002 = vand.u32 2147483647, %v1970
    %v2003 = vand.u32 2147483647, %v1971
    %v2004 = vand.u32 2147483647, %v1972
    %v2005 = vand.u32 2147483647, %v1973
    %v2006 = vand.u32 2147483647, %v1974
    %v2007 = vand.u32 2147483647, %v1975
    %v2008 = vsub.f32 1.0, %v1976
    %v2009 = vsub.f32 1.0, %v1977
    %v2010 = vsub.f32 1.0, %v1978
    %v2011 = vsub.f32 1.0, %v1979
    %v2012 = vsub.f32 1.0, %v1980
    %v2013 = vsub.f32 1.0, %v1981
    %v2014 = vsub.f32 1.0, %v1982
    %v2015 = vsub.f32 1.0, %v1983
    %v2016 = vsub.f32 1.0, %v1984
    %v2017 = vsub.f32 1.0, %v1985
    %v2018 = vsub.f32 1.0, %v1986
    %v2019 = vsub.f32 1.0, %v1987
    %v2020 = vsub.f32 1.0, %v1988
    %v2021 = vsub.f32 1.0, %v1989
    %v2022 = vsub.f32 1.0, %v1990
    %v2023 = vsub.f32 1.0, %v1991
    %v2024 = vsub.f32 1.0, %v1992
    %v2025 = vsub.f32 1.0, %v1993
    %v2026 = vsub.f32 1.0, %v1994
    %v2027 = vsub.f32 1.0, %v1995
    %v2028 = vsub.f32 1.0, %v1996
    %v2029 = vsub.f32 1.0, %v1997
    %v2030 = vsub.f32 1.0, %v1998
    %v2031 = vsub.f32 1.0, %v1999
    %v2032 = vsub.f32 1.0, %v2000
    %v2033 = vsub.f32 1.0, %v2001
    %v2034 = vsub.f32 1.0, %v2002
    %v2035 = vsub.f32 1.0, %v2003
    %v2036 = vsub.f32 1.0, %v2004
    %v2037 = vsub.f32 1.0, %v2005
    %v2038 = vsub.f32 1.0, %v2006
    %v2039 = vsub.f32 1.0, %v2007
    %v2040 = vmax.f32 %v2008, 0.0
    %v2041 = vmax.f32 %v2009, 0.0
    %v2042 = vmax.f32 %v2010, 0.0
    %v2043 = vmax.f32 %v2011, 0.0
    %v2044 = vmax.f32 %v2012, 0.0
    %v2045 = vmax.f32 %v2013, 0.0
    %v2046 = vmax.f32 %v2014, 0.0
    %v2047 = vmax.f32 %v2015, 0.0
    %v2048 = vmax.f32 %v2016, 0.0
    %v2049 = vmax.f32 %v2017, 0.0
    %v2050 = vmax.f32 %v2018, 0.0
    %v2051 = vmax.f32 %v2019, 0.0
    %v2052 = vmax.f32 %v2020, 0.0
    %v2053 = vmax.f32 %v2021, 0.0
    %v2054 = vmax.f32 %v2022, 0.0
    %v2055 = vmax.f32 %v2023, 0.0
    %v2056 = vmax.f32 %v2024, 0.0
    %v2057 = vmax.f32 %v2025, 0.0
    %v2058 = vmax.f32 %v2026, 0.0
    %v2059 = vmax.f32 %v2027, 0.0
    %v2060 = vmax.f32 %v2028, 0.0
    %v2061 = vmax.f32 %v2029, 0.0
    %v2062 = vmax.f32 %v2030, 0.0
    %v2063 = vmax.f32 %v2031, 0.0
    %v2064 = vmax.f32 %v2032, 0.0
    %v2065 = vmax.f32 %v2033, 0.0
    %v2066 = vmax.f32 %v2034, 0.0
    %v2067 = vmax.f32 %v2035, 0.0
    %v2068 = vmax.f32 %v2036, 0.0
    %v2069 = vmax.f32 %v2037, 0.0
    %v2070 = vmax.f32 %v2038, 0.0
    %v2071 = vmax.f32 %v2039, 0.0
    %v2072 = vlaneseq
    %v2073 = vshrl.u32 %v2072, 7
    %v2074 = vsub.s32 1, %v2073
    %v2075 = vrot.slane %v667, %v2074
    %v2076 = vsub.f32 %v766, %v2075
    %v2077 = vsub.f32 %v767, %v2075
    %v2078 = vsub.f32 %v768, %v2075
    %v2079 = vsub.f32 %v769, %v2075
    %v2080 = vsub.f32 %v770, %v2075
    %v2081 = vsub.f32 %v771, %v2075
    %v2082 = vsub.f32 %v772, %v2075
    %v2083 = vsub.f32 %v773, %v2075
    %v2084 = vsub.f32 %v774, %v2075
    %v2085 = vsub.f32 %v775, %v2075
    %v2086 = vsub.f32 %v776, %v2075
    %v2087 = vsub.f32 %v777, %v2075
    %v2088 = vsub.f32 %v778, %v2075
    %v2089 = vsub.f32 %v779, %v2075
    %v2090 = vsub.f32 %v780, %v2075
    %v2091 = vsub.f32 %v781, %v2075
    %v2092 = vsub.f32 %v782, %v2075
    %v2093 = vsub.f32 %v783, %v2075
    %v2094 = vsub.f32 %v784, %v2075
    %v2095 = vsub.f32 %v785, %v2075
    %v2096 = vsub.f32 %v786, %v2075
    %v2097 = vsub.f32 %v787, %v2075
    %v2098 = vsub.f32 %v788, %v2075
    %v2099 = vsub.f32 %v789, %v2075
    %v2100 = vsub.f32 %v790, %v2075
    %v2101 = vsub.f32 %v791, %v2075
    %v2102 = vsub.f32 %v792, %v2075
    %v2103 = vsub.f32 %v793, %v2075
    %v2104 = vsub.f32 %v794, %v2075
    %v2105 = vsub.f32 %v795, %v2075
    %v2106 = vsub.f32 %v796, %v2075
    %v2107 = vsub.f32 %v797, %v2075
    %v2108 = vand.u32 2147483647, %v2076
    %v2109 = vand.u32 2147483647, %v2077
    %v2110 = vand.u32 2147483647, %v2078
    %v2111 = vand.u32 2147483647, %v2079
    %v2112 = vand.u32 2147483647, %v2080
    %v2113 = vand.u32 2147483647, %v2081
    %v2114 = vand.u32 2147483647, %v2082
    %v2115 = vand.u32 2147483647, %v2083
    %v2116 = vand.u32 2147483647, %v2084
    %v2117 = vand.u32 2147483647, %v2085
    %v2118 = vand.u32 2147483647, %v2086
    %v2119 = vand.u32 2147483647, %v2087
    %v2120 = vand.u32 2147483647, %v2088
    %v2121 = vand.u32 2147483647, %v2089
    %v2122 = vand.u32 2147483647, %v2090
    %v2123 = vand.u32 2147483647, %v2091
    %v2124 = vand.u32 2147483647, %v2092
    %v2125 = vand.u32 2147483647, %v2093
    %v2126 = vand.u32 2147483647, %v2094
    %v2127 = vand.u32 2147483647, %v2095
    %v2128 = vand.u32 2147483647, %v2096
    %v2129 = vand.u32 2147483647, %v2097
    %v2130 = vand.u32 2147483647, %v2098
    %v2131 = vand.u32 2147483647, %v2099
    %v2132 = vand.u32 2147483647, %v2100
    %v2133 = vand.u32 2147483647, %v2101
    %v2134 = vand.u32 2147483647, %v2102
    %v2135 = vand.u32 2147483647, %v2103
    %v2136 = vand.u32 2147483647, %v2104
    %v2137 = vand.u32 2147483647, %v2105
    %v2138 = vand.u32 2147483647, %v2106
    %v2139 = vand.u32 2147483647, %v2107
    %v2140 = vsub.f32 1.0, %v2108
    %v2141 = vsub.f32 1.0, %v2109
    %v2142 = vsub.f32 1.0, %v2110
    %v2143 = vsub.f32 1.0, %v2111
    %v2144 = vsub.f32 1.0, %v2112
    %v2145 = vsub.f32 1.0, %v2113
    %v2146 = vsub.f32 1.0, %v2114
    %v2147 = vsub.f32 1.0, %v2115
    %v2148 = vsub.f32 1.0, %v2116
    %v2149 = vsub.f32 1.0, %v2117
    %v2150 = vsub.f32 1.0, %v2118
    %v2151 = vsub.f32 1.0, %v2119
    %v2152 = vsub.f32 1.0, %v2120
    %v2153 = vsub.f32 1.0, %v2121
    %v2154 = vsub.f32 1.0, %v2122
    %v2155 = vsub.f32 1.0, %v2123
    %v2156 = vsub.f32 1.0, %v2124
    %v2157 = vsub.f32 1.0, %v2125
    %v2158 = vsub.f32 1.0, %v2126
    %v2159 = vsub.f32 1.0, %v2127
    %v2160 = vsub.f32 1.0, %v2128
    %v2161 = vsub.f32 1.0, %v2129
    %v2162 = vsub.f32 1.0, %v2130
    %v2163 = vsub.f32 1.0, %v2131
    %v2164 = vsub.f32 1.0, %v2132
    %v2165 = vsub.f32 1.0, %v2133
    %v2166 = vsub.f32 1.0, %v2134
    %v2167 = vsub.f32 1.0, %v2135
    %v2168 = vsub.f32 1.0, %v2136
    %v2169 = vsub.f32 1.0, %v2137
    %v2170 = vsub.f32 1.0, %v2138
    %v2171 = vsub.f32 1.0, %v2139
    %v2172 = vmax.f32 %v2140, 0.0
    %v2173 = vmax.f32 %v2141, 0.0
    %v2174 = vmax.f32 %v2142, 0.0
    %v2175 = vmax.f32 %v2143, 0.0
    %v2176 = vmax.f32 %v2144, 0.0
    %v2177 = vmax.f32 %v2145, 0.0
    %v2178 = vmax.f32 %v2146, 0.0
    %v2179 = vmax.f32 %v2147, 0.0
    %v2180 = vmax.f32 %v2148, 0.0
    %v2181 = vmax.f32 %v2149, 0.0
    %v2182 = vmax.f32 %v2150, 0.0
    %v2183 = vmax.f32 %v2151, 0.0
    %v2184 = vmax.f32 %v2152, 0.0
    %v2185 = vmax.f32 %v2153, 0.0
    %v2186 = vmax.f32 %v2154, 0.0
    %v2187 = vmax.f32 %v2155, 0.0
    %v2188 = vmax.f32 %v2156, 0.0
    %v2189 = vmax.f32 %v2157, 0.0
    %v2190 = vmax.f32 %v2158, 0.0
    %v2191 = vmax.f32 %v2159, 0.0
    %v2192 = vmax.f32 %v2160, 0.0
    %v2193 = vmax.f32 %v2161, 0.0
    %v2194 = vmax.f32 %v2162, 0.0
    %v2195 = vmax.f32 %v2163, 0.0
    %v2196 = vmax.f32 %v2164, 0.0
    %v2197 = vmax.f32 %v2165, 0.0
    %v2198 = vmax.f32 %v2166, 0.0
    %v2199 = vmax.f32 %v2167, 0.0
    %v2200 = vmax.f32 %v2168, 0.0
    %v2201 = vmax.f32 %v2169, 0.0
    %v2202 = vmax.f32 %v2170, 0.0
    %v2203 = vmax.f32 %v2171, 0.0
    %v2204 = vmul.f32 %v2040, %v2172
    %v2205 = vmul.f32 %v2041, %v2173
    %v2206 = vmul.f32 %v2042, %v2174
    %v2207 = vmul.f32 %v2043, %v2175
    %v2208 = vmul.f32 %v2044, %v2176
    %v2209 = vmul.f32 %v2045, %v2177
    %v2210 = vmul.f32 %v2046, %v2178
    %v2211 = vmul.f32 %v2047, %v2179
    %v2212 = vmul.f32 %v2048, %v2180
    %v2213 = vmul.f32 %v2049, %v2181
    %v2214 = vmul.f32 %v2050, %v2182
    %v2215 = vmul.f32 %v2051, %v2183
    %v2216 = vmul.f32 %v2052, %v2184
    %v2217 = vmul.f32 %v2053, %v2185
    %v2218 = vmul.f32 %v2054, %v2186
    %v2219 = vmul.f32 %v2055, %v2187
    %v2220 = vmul.f32 %v2056, %v2188
    %v2221 = vmul.f32 %v2057, %v2189
    %v2222 = vmul.f32 %v2058, %v2190
    %v2223 = vmul.f32 %v2059, %v2191
    %v2224 = vmul.f32 %v2060, %v2192
    %v2225 = vmul.f32 %v2061, %v2193
    %v2226 = vmul.f32 %v2062, %v2194
    %v2227 = vmul.f32 %v2063, %v2195
    %v2228 = vmul.f32 %v2064, %v2196
    %v2229 = vmul.f32 %v2065, %v2197
    %v2230 = vmul.f32 %v2066, %v2198
    %v2231 = vmul.f32 %v2067, %v2199
    %v2232 = vmul.f32 %v2068, %v2200
    %v2233 = vmul.f32 %v2069, %v2201
    %v2234 = vmul.f32 %v2070, %v2202
    %v2235 = vmul.f32 %v2071, %v2203
    %2236 = vmatprep.subr.mxu0 0.0
    %2237 = vmatpush1.msra.mxu0 %v2204
    %2238 = vmatprep.subr.mxu0 0.0
    %2239 = vmatpush1.msra.mxu0 %v2205
    %2240 = vmatprep.subr.mxu0 0.0
    %2241 = vmatpush1.msra.mxu0 %v2206
    %2242 = vmatprep.subr.mxu0 0.0
    %2243 = vmatpush1.msra.mxu0 %v2207
    %2244 = vmatprep.subr.mxu0 0.0
    %2245 = vmatpush1.msra.mxu0 %v2208
    %2246 = vmatprep.subr.mxu0 0.0
    %2247 = vmatpush1.msra.mxu0 %v2209
    %2248 = vmatprep.subr.mxu0 0.0
    %2249 = vmatpush1.msra.mxu0 %v2210
    %2250 = vmatprep.subr.mxu0 0.0
    %2251 = vmatpush1.msra.mxu0 %v2211
    %2252 = vmatprep.subr.mxu0 0.0
    %2253 = vmatpush1.msra.mxu0 %v2212
    %2254 = vmatprep.subr.mxu0 0.0
    %2255 = vmatpush1.msra.mxu0 %v2213
    %2256 = vmatprep.subr.mxu0 0.0
    %2257 = vmatpush1.msra.mxu0 %v2214
    %2258 = vmatprep.subr.mxu0 0.0
    %2259 = vmatpush1.msra.mxu0 %v2215
    %2260 = vmatprep.subr.mxu0 0.0
    %2261 = vmatpush1.msra.mxu0 %v2216
    %2262 = vmatprep.subr.mxu0 0.0
    %2263 = vmatpush1.msra.mxu0 %v2217
    %2264 = vmatprep.subr.mxu0 0.0
    %2265 = vmatpush1.msra.mxu0 %v2218
    %2266 = vmatprep.subr.mxu0 0.0
    %2267 = vmatpush1.msra.mxu0 %v2219
    %2268 = vmatprep.subr.mxu0 0.0
    %2269 = vmatpush1.msra.mxu0 %v2220
    %2270 = vmatprep.subr.mxu0 0.0
    %2271 = vmatpush1.msra.mxu0 %v2221
    %2272 = vmatprep.subr.mxu0 0.0
    %2273 = vmatpush1.msra.mxu0 %v2222
    %2274 = vmatprep.subr.mxu0 0.0
    %2275 = vmatpush1.msra.mxu0 %v2223
    %2276 = vmatprep.subr.mxu0 0.0
    %2277 = vmatpush1.msra.mxu0 %v2224
    %2278 = vmatprep.subr.mxu0 0.0
    %2279 = vmatpush1.msra.mxu0 %v2225
    %2280 = vmatprep.subr.mxu0 0.0
    %2281 = vmatpush1.msra.mxu0 %v2226
    %2282 = vmatprep.subr.mxu0 0.0
    %2283 = vmatpush1.msra.mxu0 %v2227
    %2284 = vmatprep.subr.mxu0 0.0
    %2285 = vmatpush1.msra.mxu0 %v2228
    %2286 = vmatprep.subr.mxu0 0.0
    %2287 = vmatpush1.msra.mxu0 %v2229
    %2288 = vmatprep.subr.mxu0 0.0
    %2289 = vmatpush1.msra.mxu0 %v2230
    %2290 = vmatprep.subr.mxu0 0.0
    %2291 = vmatpush1.msra.mxu0 %v2231
    %2292 = vmatprep.subr.mxu0 0.0
    %2293 = vmatpush1.msra.mxu0 %v2232
    %2294 = vmatprep.subr.mxu0 0.0
    %2295 = vmatpush1.msra.mxu0 %v2233
    %2296 = vmatprep.subr.mxu0 0.0
    %2297 = vmatpush1.msra.mxu0 %v2234
    %2298 = vmatprep.subr.mxu0 0.0
    %2299 = vmatpush1.msra.mxu0 %v2235
    %2300 = vmatprep.mubr.f32.mxu0 %v1863
    %2301 = vmatmul.mubr.f32.gmra.mrb[0].mxu0 %v1862
    %v2302 = vpop.f32.mrb[0].mxu0
    %v2303 = vadd.f32 0.0, %v2302
    %v2304 = vpop.f32.mrb[0].mxu0
    %2305 = vdwg.mxu0
    %v2307 = vrot.slane %v2303, 4
    %2309 = vst [vmem:[#allocation2 + $0x8] sm:$0xf0] %v2307
    // Predicated region
    $region46: #{tpu_custom_call.1} parent=1 // pred_check
      _
    $region47: #{tpu_custom_call.1} parent=1 // pred_check_branch
      %2311 = sbr.rel (0) target = $region49
    $region48: #{tpu_custom_call.1} parent=1 // pred_region
      %s2313 = ssub.s32 256, 256
      %2314 = vsyncadd [#allocation3], %s2313
      %s2316 = sshll.u32 [#allocation2], 4
      %s2317 = int_to_ptr.vmem [resolvable:$true] %s2316
      %2319 = dma.vmem_to_hbm [thread:$0]  %s2317, 256, %s11, [#allocation3]
    $region49: #{tpu_custom_call.1} parent=1 // pred_fallthru
      _
    // Predicated region
    $region50: #{tpu_custom_call.1} parent=1 // pred_check
      _
    $region51: #{tpu_custom_call.1} parent=1 // pred_check_branch
      %2321 = sbr.rel (0) target = $region53
    $region52: #{tpu_custom_call.1} parent=1 // pred_region
      %2322 = dma.done [#allocation3], 256
    $region53: #{tpu_custom_call.1} parent=1 // pred_fallthru
      _
    %2323 = vsyncpa [#allocation3], 1

</llo_original>
